<compile_context>
chip_gen: v5e
topology: v5e:2x2
jax: 0.10.0
libtpu: 0.0.40
codegen_flags: <defaults>
</compile_context>

<pallas_src>
import functools

import jax
import jax.numpy as jnp
from jax import lax
from jax.experimental import pallas as pl
from jax.experimental.pallas import tpu as pltpu


def _round_up(x, m):
    return ((x + m - 1) // m) * m


def _cdiv(a, b):
    return -(-a // b)


# ----------------------------------------------------------------------------
# Pallas kernel: one grid step = bb batch elements (true & pred together).
# ----------------------------------------------------------------------------
def _make_sss_kernel(bb, n_tiles, tile_m, n_frames, n_sub, n_fft, f_pad, eps):
    def kernel(xt_ref, xp_ref, w_ref, out_ref):
        # xt_ref / xp_ref : (bb, C, hop)      bf16 hop-sized chunks of true/pred
        # w_ref           : (n_fft, 2*f_pad)  bf16 fused [cos | -sin] DFT matrix
        # out_ref         : (bb, 3, f_pad)    f32 partial sums (dd, ss, |dlog|)
        w = w_ref[...]                         # hoisted; single-buffered resident

        def frame_slab(x_ref, base):
            # Frames [base, base+tile_m): each frame = n_sub consecutive chunks.
            cols = [x_ref[:, pl.ds(base + j, tile_m), :] for j in range(n_sub)]
            slab = jnp.concatenate(cols, axis=-1)          # (bb, tile_m, n_fft)
            return slab.reshape(bb * tile_m, n_fft)

        def tile_body(t, carry):
            dd, ss, lg = carry
            base = t * tile_m
            slab = jnp.concatenate(
                [frame_slab(xt_ref, base), frame_slab(xp_ref, base)], axis=0)
            # Single K=n_fft bf16 matmul, f32 accumulation (default precision).
            acc = jnp.dot(slab, w, preferred_element_type=jnp.float32)
            re = acc[:, :f_pad]                             # 128-aligned slices
            im = acc[:, f_pad:]
            mag = jnp.sqrt(re * re + im * im) + eps         # f32 EUP work
            m = bb * tile_m
            s_t = mag[:m].reshape(bb, tile_m, f_pad)
            s_p = mag[m:].reshape(bb, tile_m, f_pad)
            d = s_t - s_p
            s = s_t + s_p
            l1 = jnp.abs(jnp.log(s_t) - jnp.log(s_p))
            # Mask frame rows beyond n_frames (tail tile / 8-row rounding).
            rows = lax.broadcasted_iota(jnp.int32, (1, tile_m, 1), 1) + base
            valid = (rows < n_frames).astype(jnp.float32)
            dd = dd + jnp.sum(valid * d * d, axis=1)        # (bb, f_pad)
            ss = ss + jnp.sum(valid * s * s, axis=1)
            lg = lg + jnp.sum(valid * l1, axis=1)
            return dd, ss, lg

        init = (jnp.zeros((bb, f_pad), jnp.float32),) * 3
        if n_tiles == 1:
            dd, ss, lg = tile_body(0, init)                 # fully static slices
        else:
            dd, ss, lg = lax.fori_loop(0, n_tiles, tile_body, init)

        out_ref[:, 0, :] = dd
        out_ref[:, 1, :] = ss
        out_ref[:, 2, :] = lg

    return kernel


# ----------------------------------------------------------------------------
# Fused DFT matrix: periodic Hann window and torchaudio normalized=True factor
# folded in; freq axis zero-padded to a multiple of 128 lanes; [cos | -sin].
# ----------------------------------------------------------------------------
def _dft_matrix(n_fft, f_pad):
    n = jnp.arange(n_fft, dtype=jnp.float32)
    win = 0.5 * (1.0 - jnp.cos(2.0 * jnp.pi * n / n_fft))
    norm = jnp.sqrt(jnp.sum(win * win))
    n_freq = n_fft // 2 + 1
    k = jnp.arange(n_freq, dtype=jnp.float32)
    ang = 2.0 * jnp.pi * n[:, None] * k[None, :] / n_fft
    wc = (win[:, None] * jnp.cos(ang)) / norm
    ws = (-win[:, None] * jnp.sin(ang)) / norm
    pad = f_pad - n_freq
    wc = jnp.pad(wc, ((0, 0), (0, pad)))
    ws = jnp.pad(ws, ((0, 0), (0, pad)))
    return jnp.concatenate([wc, ws], axis=1)                # (n_fft, 2*f_pad)


def _pick_block_batch(batch, tile_m, target_m=256):
    # Pack bb batch elements per grid step so M = 2*bb*tile_m ({true,pred} frames
    # stacked) approaches the MXU-friendly target, while keeping >= 2 grid steps
    # when the batch allows (v7x: two TensorCores + pipeline depth).
    cap = max(1, target_m // (2 * tile_m))
    if batch >= 2:
        cap = min(cap, batch // 2)
    cap = max(cap, 1)
    bb = 1
    for d in range(1, batch + 1):
        if batch % d == 0 and d <= cap:
            bb = d
    return bb


# ----------------------------------------------------------------------------
# Single-scale spectral loss (SSSLoss.forward equivalent).
# ----------------------------------------------------------------------------
def sss_loss(x_true, x_pred, n_fft, alpha=1.0, overlap=0.0, eps=1e-7):
    hop = int(n_fft * (1 - overlap))
    if hop <= 0 or n_fft % hop != 0:
        # TODO(synk): gather-based framing path for hops that do not divide n_fft;
        # documented MSSLoss usage (overlap=0.75, power-of-two n_fft) always does.
        raise NotImplementedError("hop_length must evenly divide n_fft")

    batch, length = x_true.shape
    if length < n_fft:
        raise ValueError("signal shorter than n_fft")
    n_frames = 1 + (length - n_fft) // hop                   # center=False framing
    n_sub = n_fft // hop
    n_freq = n_fft // 2 + 1
    f_pad = _round_up(n_freq, 128)

    # Frame tiling: <= 256 frames per in-kernel tile, 8-aligned rows (tail masked).
    n_tiles = _cdiv(n_frames, 256)
    tile_m = _round_up(_cdiv(n_frames, n_tiles), 8)
    bb = _pick_block_batch(batch, tile_m)
    n_blocks = batch // bb

    # Hop-sized chunking is a pure reshape (1x HBM traffic); overlapping frames
    # are realized in-kernel.  bf16 MXU feed (keep x f32 if accuracy ever requires).
    needed_chunks = n_tiles * tile_m + n_sub - 1
    total = needed_chunks * hop

    def chunk(x):
        x = x[:, :min(length, total)].astype(jnp.bfloat16)
        if total > x.shape[1]:
            x = jnp.pad(x, ((0, 0), (0, total - x.shape[1])))
        return x.reshape(batch, needed_chunks, hop)

    xt = chunk(x_true)
    xp = chunk(x_pred)
    w = _dft_matrix(n_fft, f_pad).astype(jnp.bfloat16)       # (n_fft, 2*f_pad)
    # TODO(synk): frequency-axis tiling of W for n_fft >= 4096 on v7x (64 MiB VMEM).

    # VMEM budget: bf16 inputs double-buffered, W single-buffered, plus in-kernel
    # frame slab / f32 accumulator / magnitudes; clamp to v7x's 64 MiB physical.
    est = (2 * 2 * bb * needed_chunks * hop * 2              # two bf16 inputs, 2 bufs
           + n_fft * 2 * f_pad * 2                           # W (Buffered(1))
           + 2 * bb * 3 * f_pad * 4                          # output, 2 bufs
           + 2 * bb * tile_m * n_fft * 2                     # frame slab (bf16)
           + 2 * bb * tile_m * 2 * f_pad * 4                 # matmul acc (f32)
           + 6 * bb * tile_m * f_pad * 4)                    # magnitudes & friends
    vmem_limit = int(min(max(3 * est // 2 + (1 << 20), 32 << 20), 64 << 20))

    m_total = 2 * batch * n_tiles * tile_m
    cost = pl.CostEstimate(
        flops=2 * m_total * n_fft * 2 * f_pad,
        transcendentals=2 * m_total * f_pad,
        bytes_accessed=(2 * batch * needed_chunks * hop * 2
                        + n_fft * 2 * f_pad * 2
                        + batch * 3 * f_pad * 4))

    out = pl.pallas_call(
        _make_sss_kernel(bb, n_tiles, tile_m, n_frames, n_sub, n_fft, f_pad, eps),
        out_shape=jax.ShapeDtypeStruct((batch, 3, f_pad), jnp.float32),
        grid=(n_blocks,),
        in_specs=[
            pl.BlockSpec((bb, needed_chunks, hop), lambda i: (i, 0, 0)),
            pl.BlockSpec((bb, needed_chunks, hop), lambda i: (i, 0, 0)),
            pl.BlockSpec((n_fft, 2 * f_pad), lambda i: (0, 0),
                         pipeline_mode=pl.Buffered(1)),       # grid-invariant W
        ],
        out_specs=pl.BlockSpec((bb, 3, f_pad), lambda i: (i, 0, 0)),
        compiler_params=pltpu.CompilerParams(
            dimension_semantics=("parallel",),
            vmem_limit_bytes=vmem_limit),
        cost_estimate=cost,
    )(xt, xp, w)

    # Tiny O(B*n_freq) finalization in plain JAX; padded freq lanes are dropped
    # so they never enter the Frobenius norms / l1 mean.
    dd = out[:, 0, :n_freq]
    ss = out[:, 1, :n_freq]
    lg = out[:, 2, :n_freq]
    num = jnp.sqrt(jnp.sum(dd, axis=1))                      # ||S_t - S_p||_F
    den = jnp.sqrt(jnp.sum(ss, axis=1))                      # ||S_t + S_p||_F
    converge_term = jnp.mean(num / den)
    log_term = jnp.sum(lg) / (batch * n_freq * n_frames)     # F.l1_loss mean
    return converge_term + alpha * log_term


# ----------------------------------------------------------------------------
# Multi-scale spectral loss (MSSLoss.forward equivalent).
# ----------------------------------------------------------------------------
def mss_loss(x_pred, x_true, n_ffts, alpha=1.0, overlap=0.75, eps=1e-7):
    x_pred = x_pred[..., : x_true.shape[-1]]
    # Cast to bf16 once (not per scale) so per-scale chunking is reshape-only.
    xt = x_true.astype(jnp.bfloat16)
    xp = x_pred.astype(jnp.bfloat16)
    value = jnp.float32(0.0)
    for n_fft in n_ffts:
        value = value + sss_loss(xt, xp, n_fft, alpha, overlap, eps)
    return value


# ----------------------------------------------------------------------------
# Pure-JAX references for the sanity check.
# ----------------------------------------------------------------------------
def _frame_ref(x, n_fft, hop):
    length = x.shape[-1]
    n_frames = 1 + (length - n_fft) // hop
    idx = hop * jnp.arange(n_frames)[:, None] + jnp.arange(n_fft)[None, :]
    return x[:, idx]                                          # (B, T, n_fft)


def _spec_ref(x, n_fft, hop, quantize):
    frames = _frame_ref(x.astype(jnp.float32), n_fft, hop)
    n = jnp.arange(n_fft, dtype=jnp.float32)
    win = 0.5 * (1.0 - jnp.cos(2.0 * jnp.pi * n / n_fft))
    norm = jnp.sqrt(jnp.sum(win * win))
    n_freq = n_fft // 2 + 1
    if quantize:
        # Mirror the kernel's bf16 operands (bf16 x bf16 products are exact in f32).
        w = _dft_matrix(n_fft, _round_up(n_freq, 128))
        w = w.astype(jnp.bfloat16).astype(jnp.float32)
        frames = frames.astype(jnp.bfloat16).astype(jnp.float32)
        acc = jnp.einsum("btk,kf->btf", frames, w)
        f_pad = w.shape[1] // 2
        re = acc[..., :n_freq]
        im = acc[..., f_pad:f_pad + n_freq]
        return jnp.sqrt(re * re + im * im)                    # (B, T, F)
    return jnp.abs(jnp.fft.rfft(frames * win, axis=-1)) / norm


def mss_loss_ref(x_pred, x_true, n_ffts, alpha=1.0, overlap=0.75, eps=1e-7,
                 quantize=False):
    x_pred = x_pred[..., : x_true.shape[-1]]
    total = jnp.float32(0.0)
    for n_fft in n_ffts:
        hop = int(n_fft * (1 - overlap))
        s_t = _spec_ref(x_true, n_fft, hop, quantize) + eps
        s_p = _spec_ref(x_pred, n_fft, hop, quantize) + eps
        num = jnp.sqrt(jnp.sum((s_t - s_p) ** 2, axis=(1, 2)))
        den = jnp.sqrt(jnp.sum((s_t + s_p) ** 2, axis=(1, 2)))
        converge = jnp.mean(num / den)
        log_term = jnp.mean(jnp.abs(jnp.log(s_t) - jnp.log(s_p)))
        total = total + converge + alpha * log_term
    return total


if __name__ == "__main__":
    key = jax.random.PRNGKey(0)
    k1, k2, k3, k4 = jax.random.split(key, 4)

    alpha, overlap, eps = 1.0, 0.75, 1e-7

    # Case A: small, batch-packed (hop=64/32, single frame tile, bb=2 path).
    batch_a, true_len, pred_len = 4, 1024, 1040
    n_ffts_a = [256, 128]
    xt_a = jax.random.normal(k1, (batch_a, true_len), dtype=jnp.float32)
    xp_a = (jnp.pad(xt_a, ((0, 0), (0, pred_len - true_len)))
            + 0.1 * jax.random.normal(k2, (batch_a, pred_len), dtype=jnp.float32))

    # Case B: longer audio -> multi-tile frame loop inside the kernel.
    batch_b, len_b = 2, 20000
    n_ffts_b = [512, 256]
    xt_b = jax.random.normal(k3, (batch_b, len_b), dtype=jnp.float32)
    xp_b = xt_b + 0.05 * jax.random.normal(k4, (batch_b, len_b), dtype=jnp.float32)

    for (xp, xt, n_ffts) in ((xp_a, xt_a, n_ffts_a), (xp_b, xt_b, n_ffts_b)):
        loss_fn = jax.jit(functools.partial(
            mss_loss, n_ffts=n_ffts, alpha=alpha, overlap=overlap, eps=eps))
        loss = float(jax.block_until_ready(loss_fn(xp, xt)))

        ref_q = float(mss_loss_ref(xp, xt, n_ffts, alpha, overlap, eps,
                                   quantize=True))
        ref_f = float(mss_loss_ref(xp, xt, n_ffts, alpha, overlap, eps,
                                   quantize=False))

        assert jnp.isfinite(loss), "loss is not finite"
        # Tight check vs a reference with identical bf16 operand rounding.
        assert abs(loss - ref_q) <= 2e-3 * abs(ref_q) + 1e-5, (
            f"pallas={loss} quantized_ref={ref_q}")
        # Loose check vs the full-f32 rfft reference (bf16 feed approximation).
        assert abs(loss - ref_f) <= 5e-2 * abs(ref_f) + 1e-4, (
            f"pallas={loss} f32_ref={ref_f}")

    print("KERNEL_OK")
</pallas_src>

<mosaic_0001>
module attributes {stable_mosaic.version = 11 : i64} {
  func.func @kernel(%arg0: i32, %arg1: memref<2x35x32xbf16, #tpu.memory_space<vmem>>, %arg2: memref<2x35x32xbf16, #tpu.memory_space<vmem>>, %arg3: memref<128x256xbf16, #tpu.memory_space<vmem>>, %arg4: memref<2x3x128xf32, #tpu.memory_space<vmem>>) attributes {dimension_semantics = [#tpu.dimension_semantics<parallel>], iteration_bounds = array<i64: 2>, scalar_prefetch = 0 : i64, scratch_operands = 0 : i64, tpu.core_type = #tpu.core_type<tc>, window_params = [{transform_indices = @transform_0, window_bounds = array<i64: 2, 35, 32>}, {transform_indices = @transform_1, window_bounds = array<i64: 2, 35, 32>}, {pipeline_mode = #tpu.pipeline_mode<synchronous>, transform_indices = @transform_2, window_bounds = array<i64: 128, 256>}, {transform_indices = @transform_3, window_bounds = array<i64: 2, 3, 128>}]} {
    %c0 = arith.constant 0 : index
    %c0_0 = arith.constant 0 : index
    %0 = vector.load %arg3[%c0, %c0_0] : memref<128x256xbf16, #tpu.memory_space<vmem>>, vector<128x256xbf16>
    %cst = arith.constant 0.000000e+00 : f32
    %1 = vector.broadcast %cst : f32 to vector<2x128xf32>
    %c0_1 = arith.constant 0 : index
    %c0_2 = arith.constant 0 : index
    %c0_3 = arith.constant 0 : index
    %2 = vector.load %arg1[%c0_1, %c0_2, %c0_3] : memref<2x35x32xbf16, #tpu.memory_space<vmem>>, vector<2x32x32xbf16>
    %c0_4 = arith.constant 0 : index
    %c1 = arith.constant 1 : index
    %c0_5 = arith.constant 0 : index
    %3 = vector.load %arg1[%c0_4, %c1, %c0_5] : memref<2x35x32xbf16, #tpu.memory_space<vmem>>, vector<2x32x32xbf16>
    %c0_6 = arith.constant 0 : index
    %c2 = arith.constant 2 : index
    %c0_7 = arith.constant 0 : index
    %4 = vector.load %arg1[%c0_6, %c2, %c0_7] : memref<2x35x32xbf16, #tpu.memory_space<vmem>>, vector<2x32x32xbf16>
    %c0_8 = arith.constant 0 : index
    %c3 = arith.constant 3 : index
    %c0_9 = arith.constant 0 : index
    %5 = vector.load %arg1[%c0_8, %c3, %c0_9] : memref<2x35x32xbf16, #tpu.memory_space<vmem>>, vector<2x32x32xbf16>
    %6 = tpu.concatenate %2, %3, %4, %5 in 2 : vector<2x32x32xbf16>, vector<2x32x32xbf16>, vector<2x32x32xbf16>, vector<2x32x32xbf16> -> vector<2x32x128xbf16>
    %7 = vector.shape_cast %6 : vector<2x32x128xbf16> to vector<64x128xbf16>
    %c0_10 = arith.constant 0 : index
    %c0_11 = arith.constant 0 : index
    %c0_12 = arith.constant 0 : index
    %8 = vector.load %arg2[%c0_10, %c0_11, %c0_12] : memref<2x35x32xbf16, #tpu.memory_space<vmem>>, vector<2x32x32xbf16>
    %c0_13 = arith.constant 0 : index
    %c1_14 = arith.constant 1 : index
    %c0_15 = arith.constant 0 : index
    %9 = vector.load %arg2[%c0_13, %c1_14, %c0_15] : memref<2x35x32xbf16, #tpu.memory_space<vmem>>, vector<2x32x32xbf16>
    %c0_16 = arith.constant 0 : index
    %c2_17 = arith.constant 2 : index
    %c0_18 = arith.constant 0 : index
    %10 = vector.load %arg2[%c0_16, %c2_17, %c0_18] : memref<2x35x32xbf16, #tpu.memory_space<vmem>>, vector<2x32x32xbf16>
    %c0_19 = arith.constant 0 : index
    %c3_20 = arith.constant 3 : index
    %c0_21 = arith.constant 0 : index
    %11 = vector.load %arg2[%c0_19, %c3_20, %c0_21] : memref<2x35x32xbf16, #tpu.memory_space<vmem>>, vector<2x32x32xbf16>
    %12 = tpu.concatenate %8, %9, %10, %11 in 2 : vector<2x32x32xbf16>, vector<2x32x32xbf16>, vector<2x32x32xbf16>, vector<2x32x32xbf16> -> vector<2x32x128xbf16>
    %13 = vector.shape_cast %12 : vector<2x32x128xbf16> to vector<64x128xbf16>
    %14 = tpu.concatenate %7, %13 in 0 : vector<64x128xbf16>, vector<64x128xbf16> -> vector<128x128xbf16>
    %cst_22 = arith.constant dense<0.000000e+00> : vector<128x256xf32>
    %15 = tpu.matmul %14, %0, %cst_22 {dimension_numbers = #tpu.dot_dimension_numbers<[1], [0], [0], [1], [0, 0, 1, 1], [], []>} : vector<128x128xbf16>, vector<128x256xbf16>, vector<128x256xf32> -> vector<128x256xf32>
    %16 = vector.extract_strided_slice %15 {offsets = [0, 0], sizes = [128, 128], strides = [1, 1]} : vector<128x256xf32> to vector<128x128xf32>
    %17 = vector.extract_strided_slice %15 {offsets = [0, 128], sizes = [128, 128], strides = [1, 1]} : vector<128x256xf32> to vector<128x128xf32>
    %18 = arith.mulf %16, %16 : vector<128x128xf32>
    %19 = arith.mulf %17, %17 : vector<128x128xf32>
    %20 = arith.addf %18, %19 : vector<128x128xf32>
    %21 = math.sqrt %20 : vector<128x128xf32>
    %cst_23 = arith.constant 1.000000e-07 : f32
    %22 = vector.broadcast %cst_23 : f32 to vector<128x128xf32>
    %23 = arith.addf %21, %22 : vector<128x128xf32>
    %24 = vector.extract_strided_slice %23 {offsets = [0, 0], sizes = [64, 128], strides = [1, 1]} : vector<128x128xf32> to vector<64x128xf32>
    %25 = vector.shape_cast %24 : vector<64x128xf32> to vector<2x32x128xf32>
    %26 = vector.extract_strided_slice %23 {offsets = [64, 0], sizes = [64, 128], strides = [1, 1]} : vector<128x128xf32> to vector<64x128xf32>
    %27 = vector.shape_cast %26 : vector<64x128xf32> to vector<2x32x128xf32>
    %28 = arith.subf %25, %27 : vector<2x32x128xf32>
    %29 = arith.addf %25, %27 : vector<2x32x128xf32>
    %30 = math.log %25 : vector<2x32x128xf32>
    %31 = math.log %27 : vector<2x32x128xf32>
    %32 = arith.subf %30, %31 : vector<2x32x128xf32>
    %33 = math.absf %32 : vector<2x32x128xf32>
    %34 = tpu.iota {dimensions = array<i32: 1>} : vector<1x32x1xi32>
    %c0_i32 = arith.constant 0 : i32
    %35 = vector.broadcast %c0_i32 : i32 to vector<1x32x1xi32>
    %36 = arith.addi %34, %35 : vector<1x32x1xi32>
    %c29_i32 = arith.constant 29 : i32
    %37 = vector.broadcast %c29_i32 : i32 to vector<1x32x1xi32>
    %38 = arith.cmpi slt, %36, %37 : vector<1x32x1xi32>
    %39 = arith.extui %38 : vector<1x32x1xi1> to vector<1x32x1xi32>
    %40 = arith.sitofp %39 : vector<1x32x1xi32> to vector<1x32x1xf32>
    %41 = vector.broadcast %40 : vector<1x32x1xf32> to vector<2x32x128xf32>
    %42 = arith.mulf %41, %28 : vector<2x32x128xf32>
    %43 = arith.mulf %42, %28 : vector<2x32x128xf32>
    %cst_24 = arith.constant dense<0.000000e+00> : vector<2x128xf32>
    %44 = vector.multi_reduction <add>, %43, %cst_24 [1] : vector<2x32x128xf32> to vector<2x128xf32>
    %45 = arith.addf %1, %44 : vector<2x128xf32>
    %46 = vector.broadcast %40 : vector<1x32x1xf32> to vector<2x32x128xf32>
    %47 = arith.mulf %46, %29 : vector<2x32x128xf32>
    %48 = arith.mulf %47, %29 : vector<2x32x128xf32>
    %cst_25 = arith.constant dense<0.000000e+00> : vector<2x128xf32>
    %49 = vector.multi_reduction <add>, %48, %cst_25 [1] : vector<2x32x128xf32> to vector<2x128xf32>
    %50 = arith.addf %1, %49 : vector<2x128xf32>
    %51 = vector.broadcast %40 : vector<1x32x1xf32> to vector<2x32x128xf32>
    %52 = arith.mulf %51, %33 : vector<2x32x128xf32>
    %cst_26 = arith.constant dense<0.000000e+00> : vector<2x128xf32>
    %53 = vector.multi_reduction <add>, %52, %cst_26 [1] : vector<2x32x128xf32> to vector<2x128xf32>
    %54 = arith.addf %1, %53 : vector<2x128xf32>
    %c0_27 = arith.constant 0 : index
    %c0_28 = arith.constant 0 : index
    %c0_29 = arith.constant 0 : index
    %55 = vector.load %arg4[%c0_27, %c0_28, %c0_29] : memref<2x3x128xf32, #tpu.memory_space<vmem>>, vector<2x1x128xf32>
    %56 = vector.shape_cast %55 : vector<2x1x128xf32> to vector<2x128xf32>
    %57 = vector.shape_cast %45 : vector<2x128xf32> to vector<2x1x128xf32>
    tpu.vector_store %arg4[%c0_27, %c0_28, %c0_29], %57 {strides = array<i32>} : memref<2x3x128xf32, #tpu.memory_space<vmem>>, vector<2x1x128xf32>,
    %c0_30 = arith.constant 0 : index
    %c1_31 = arith.constant 1 : index
    %c0_32 = arith.constant 0 : index
    %58 = vector.load %arg4[%c0_30, %c1_31, %c0_32] : memref<2x3x128xf32, #tpu.memory_space<vmem>>, vector<2x1x128xf32>
    %59 = vector.shape_cast %58 : vector<2x1x128xf32> to vector<2x128xf32>
    %60 = vector.shape_cast %50 : vector<2x128xf32> to vector<2x1x128xf32>
    tpu.vector_store %arg4[%c0_30, %c1_31, %c0_32], %60 {strides = array<i32>} : memref<2x3x128xf32, #tpu.memory_space<vmem>>, vector<2x1x128xf32>,
    %c0_33 = arith.constant 0 : index
    %c2_34 = arith.constant 2 : index
    %c0_35 = arith.constant 0 : index
    %61 = vector.load %arg4[%c0_33, %c2_34, %c0_35] : memref<2x3x128xf32, #tpu.memory_space<vmem>>, vector<2x1x128xf32>
    %62 = vector.shape_cast %61 : vector<2x1x128xf32> to vector<2x128xf32>
    %63 = vector.shape_cast %54 : vector<2x128xf32> to vector<2x1x128xf32>
    tpu.vector_store %arg4[%c0_33, %c2_34, %c0_35], %63 {strides = array<i32>} : memref<2x3x128xf32, #tpu.memory_space<vmem>>, vector<2x1x128xf32>,
    return
  }
  func.func @transform_0(%arg0: i32) -> (i32, i32, i32) {
    %c0_i32 = arith.constant 0 : i32
    %c0_i32_0 = arith.constant 0 : i32
    %c0_i32_1 = arith.constant 0 : i32
    return %arg0, %c0_i32, %c0_i32_0 : i32, i32, i32
  }
  func.func @transform_1(%arg0: i32) -> (i32, i32, i32) {
    %c0_i32 = arith.constant 0 : i32
    %c0_i32_0 = arith.constant 0 : i32
    %c0_i32_1 = arith.constant 0 : i32
    return %arg0, %c0_i32, %c0_i32_0 : i32, i32, i32
  }
  func.func @transform_2(%arg0: i32) -> (i32, i32) {
    %c0_i32 = arith.constant 0 : i32
    %c0_i32_0 = arith.constant 0 : i32
    %c0_i32_1 = arith.constant 0 : i32
    return %c0_i32, %c0_i32_0 : i32, i32
  }
  func.func @transform_3(%arg0: i32) -> (i32, i32, i32) {
    %c0_i32 = arith.constant 0 : i32
    %c0_i32_0 = arith.constant 0 : i32
    %c0_i32_1 = arith.constant 0 : i32
    return %arg0, %c0_i32, %c0_i32_0 : i32, i32, i32
  }
}

module attributes {stable_mosaic.version = 11 : i64} {
  func.func @kernel(%arg0: i32, %arg1: memref<2x19x64xbf16, #tpu.memory_space<vmem>>, %arg2: memref<2x19x64xbf16, #tpu.memory_space<vmem>>, %arg3: memref<256x512xbf16, #tpu.memory_space<vmem>>, %arg4: memref<2x3x256xf32, #tpu.memory_space<vmem>>) attributes {dimension_semantics = [#tpu.dimension_semantics<parallel>], iteration_bounds = array<i64: 2>, scalar_prefetch = 0 : i64, scratch_operands = 0 : i64, tpu.core_type = #tpu.core_type<tc>, window_params = [{transform_indices = @transform_0, window_bounds = array<i64: 2, 19, 64>}, {transform_indices = @transform_1, window_bounds = array<i64: 2, 19, 64>}, {pipeline_mode = #tpu.pipeline_mode<synchronous>, transform_indices = @transform_2, window_bounds = array<i64: 256, 512>}, {transform_indices = @transform_3, window_bounds = array<i64: 2, 3, 256>}]} {
    %c0 = arith.constant 0 : index
    %c0_0 = arith.constant 0 : index
    %0 = vector.load %arg3[%c0, %c0_0] : memref<256x512xbf16, #tpu.memory_space<vmem>>, vector<256x512xbf16>
    %cst = arith.constant 0.000000e+00 : f32
    %1 = vector.broadcast %cst : f32 to vector<2x256xf32>
    %c0_1 = arith.constant 0 : index
    %c0_2 = arith.constant 0 : index
    %c0_3 = arith.constant 0 : index
    %2 = vector.load %arg1[%c0_1, %c0_2, %c0_3] : memref<2x19x64xbf16, #tpu.memory_space<vmem>>, vector<2x16x64xbf16>
    %c0_4 = arith.constant 0 : index
    %c1 = arith.constant 1 : index
    %c0_5 = arith.constant 0 : index
    %3 = vector.load %arg1[%c0_4, %c1, %c0_5] : memref<2x19x64xbf16, #tpu.memory_space<vmem>>, vector<2x16x64xbf16>
    %c0_6 = arith.constant 0 : index
    %c2 = arith.constant 2 : index
    %c0_7 = arith.constant 0 : index
    %4 = vector.load %arg1[%c0_6, %c2, %c0_7] : memref<2x19x64xbf16, #tpu.memory_space<vmem>>, vector<2x16x64xbf16>
    %c0_8 = arith.constant 0 : index
    %c3 = arith.constant 3 : index
    %c0_9 = arith.constant 0 : index
    %5 = vector.load %arg1[%c0_8, %c3, %c0_9] : memref<2x19x64xbf16, #tpu.memory_space<vmem>>, vector<2x16x64xbf16>
    %6 = tpu.concatenate %2, %3, %4, %5 in 2 : vector<2x16x64xbf16>, vector<2x16x64xbf16>, vector<2x16x64xbf16>, vector<2x16x64xbf16> -> vector<2x16x256xbf16>
    %7 = vector.shape_cast %6 : vector<2x16x256xbf16> to vector<32x256xbf16>
    %c0_10 = arith.constant 0 : index
    %c0_11 = arith.constant 0 : index
    %c0_12 = arith.constant 0 : index
    %8 = vector.load %arg2[%c0_10, %c0_11, %c0_12] : memref<2x19x64xbf16, #tpu.memory_space<vmem>>, vector<2x16x64xbf16>
    %c0_13 = arith.constant 0 : index
    %c1_14 = arith.constant 1 : index
    %c0_15 = arith.constant 0 : index
    %9 = vector.load %arg2[%c0_13, %c1_14, %c0_15] : memref<2x19x64xbf16, #tpu.memory_space<vmem>>, vector<2x16x64xbf16>
    %c0_16 = arith.constant 0 : index
    %c2_17 = arith.constant 2 : index
    %c0_18 = arith.constant 0 : index
    %10 = vector.load %arg2[%c0_16, %c2_17, %c0_18] : memref<2x19x64xbf16, #tpu.memory_space<vmem>>, vector<2x16x64xbf16>
    %c0_19 = arith.constant 0 : index
    %c3_20 = arith.constant 3 : index
    %c0_21 = arith.constant 0 : index
    %11 = vector.load %arg2[%c0_19, %c3_20, %c0_21] : memref<2x19x64xbf16, #tpu.memory_space<vmem>>, vector<2x16x64xbf16>
    %12 = tpu.concatenate %8, %9, %10, %11 in 2 : vector<2x16x64xbf16>, vector<2x16x64xbf16>, vector<2x16x64xbf16>, vector<2x16x64xbf16> -> vector<2x16x256xbf16>
    %13 = vector.shape_cast %12 : vector<2x16x256xbf16> to vector<32x256xbf16>
    %14 = tpu.concatenate %7, %13 in 0 : vector<32x256xbf16>, vector<32x256xbf16> -> vector<64x256xbf16>
    %cst_22 = arith.constant dense<0.000000e+00> : vector<64x512xf32>
    %15 = tpu.matmul %14, %0, %cst_22 {dimension_numbers = #tpu.dot_dimension_numbers<[1], [0], [0], [1], [0, 0, 1, 1], [], []>} : vector<64x256xbf16>, vector<256x512xbf16>, vector<64x512xf32> -> vector<64x512xf32>
    %16 = vector.extract_strided_slice %15 {offsets = [0, 0], sizes = [64, 256], strides = [1, 1]} : vector<64x512xf32> to vector<64x256xf32>
    %17 = vector.extract_strided_slice %15 {offsets = [0, 256], sizes = [64, 256], strides = [1, 1]} : vector<64x512xf32> to vector<64x256xf32>
    %18 = arith.mulf %16, %16 : vector<64x256xf32>
    %19 = arith.mulf %17, %17 : vector<64x256xf32>
    %20 = arith.addf %18, %19 : vector<64x256xf32>
    %21 = math.sqrt %20 : vector<64x256xf32>
    %cst_23 = arith.constant 1.000000e-07 : f32
    %22 = vector.broadcast %cst_23 : f32 to vector<64x256xf32>
    %23 = arith.addf %21, %22 : vector<64x256xf32>
    %24 = vector.extract_strided_slice %23 {offsets = [0, 0], sizes = [32, 256], strides = [1, 1]} : vector<64x256xf32> to vector<32x256xf32>
    %25 = vector.shape_cast %24 : vector<32x256xf32> to vector<2x16x256xf32>
    %26 = vector.extract_strided_slice %23 {offsets = [32, 0], sizes = [32, 256], strides = [1, 1]} : vector<64x256xf32> to vector<32x256xf32>
    %27 = vector.shape_cast %26 : vector<32x256xf32> to vector<2x16x256xf32>
    %28 = arith.subf %25, %27 : vector<2x16x256xf32>
    %29 = arith.addf %25, %27 : vector<2x16x256xf32>
    %30 = math.log %25 : vector<2x16x256xf32>
    %31 = math.log %27 : vector<2x16x256xf32>
    %32 = arith.subf %30, %31 : vector<2x16x256xf32>
    %33 = math.absf %32 : vector<2x16x256xf32>
    %34 = tpu.iota {dimensions = array<i32: 1>} : vector<1x16x1xi32>
    %c0_i32 = arith.constant 0 : i32
    %35 = vector.broadcast %c0_i32 : i32 to vector<1x16x1xi32>
    %36 = arith.addi %34, %35 : vector<1x16x1xi32>
    %c13_i32 = arith.constant 13 : i32
    %37 = vector.broadcast %c13_i32 : i32 to vector<1x16x1xi32>
    %38 = arith.cmpi slt, %36, %37 : vector<1x16x1xi32>
    %39 = arith.extui %38 : vector<1x16x1xi1> to vector<1x16x1xi32>
    %40 = arith.sitofp %39 : vector<1x16x1xi32> to vector<1x16x1xf32>
    %41 = vector.broadcast %40 : vector<1x16x1xf32> to vector<2x16x256xf32>
    %42 = arith.mulf %41, %28 : vector<2x16x256xf32>
    %43 = arith.mulf %42, %28 : vector<2x16x256xf32>
    %cst_24 = arith.constant dense<0.000000e+00> : vector<2x256xf32>
    %44 = vector.multi_reduction <add>, %43, %cst_24 [1] : vector<2x16x256xf32> to vector<2x256xf32>
    %45 = arith.addf %1, %44 : vector<2x256xf32>
    %46 = vector.broadcast %40 : vector<1x16x1xf32> to vector<2x16x256xf32>
    %47 = arith.mulf %46, %29 : vector<2x16x256xf32>
    %48 = arith.mulf %47, %29 : vector<2x16x256xf32>
    %cst_25 = arith.constant dense<0.000000e+00> : vector<2x256xf32>
    %49 = vector.multi_reduction <add>, %48, %cst_25 [1] : vector<2x16x256xf32> to vector<2x256xf32>
    %50 = arith.addf %1, %49 : vector<2x256xf32>
    %51 = vector.broadcast %40 : vector<1x16x1xf32> to vector<2x16x256xf32>
    %52 = arith.mulf %51, %33 : vector<2x16x256xf32>
    %cst_26 = arith.constant dense<0.000000e+00> : vector<2x256xf32>
    %53 = vector.multi_reduction <add>, %52, %cst_26 [1] : vector<2x16x256xf32> to vector<2x256xf32>
    %54 = arith.addf %1, %53 : vector<2x256xf32>
    %c0_27 = arith.constant 0 : index
    %c0_28 = arith.constant 0 : index
    %c0_29 = arith.constant 0 : index
    %55 = vector.load %arg4[%c0_27, %c0_28, %c0_29] : memref<2x3x256xf32, #tpu.memory_space<vmem>>, vector<2x1x256xf32>
    %56 = vector.shape_cast %55 : vector<2x1x256xf32> to vector<2x256xf32>
    %57 = vector.shape_cast %45 : vector<2x256xf32> to vector<2x1x256xf32>
    tpu.vector_store %arg4[%c0_27, %c0_28, %c0_29], %57 {strides = array<i32>} : memref<2x3x256xf32, #tpu.memory_space<vmem>>, vector<2x1x256xf32>,
    %c0_30 = arith.constant 0 : index
    %c1_31 = arith.constant 1 : index
    %c0_32 = arith.constant 0 : index
    %58 = vector.load %arg4[%c0_30, %c1_31, %c0_32] : memref<2x3x256xf32, #tpu.memory_space<vmem>>, vector<2x1x256xf32>
    %59 = vector.shape_cast %58 : vector<2x1x256xf32> to vector<2x256xf32>
    %60 = vector.shape_cast %50 : vector<2x256xf32> to vector<2x1x256xf32>
    tpu.vector_store %arg4[%c0_30, %c1_31, %c0_32], %60 {strides = array<i32>} : memref<2x3x256xf32, #tpu.memory_space<vmem>>, vector<2x1x256xf32>,
    %c0_33 = arith.constant 0 : index
    %c2_34 = arith.constant 2 : index
    %c0_35 = arith.constant 0 : index
    %61 = vector.load %arg4[%c0_33, %c2_34, %c0_35] : memref<2x3x256xf32, #tpu.memory_space<vmem>>, vector<2x1x256xf32>
    %62 = vector.shape_cast %61 : vector<2x1x256xf32> to vector<2x256xf32>
    %63 = vector.shape_cast %54 : vector<2x256xf32> to vector<2x1x256xf32>
    tpu.vector_store %arg4[%c0_33, %c2_34, %c0_35], %63 {strides = array<i32>} : memref<2x3x256xf32, #tpu.memory_space<vmem>>, vector<2x1x256xf32>,
    return
  }
  func.func @transform_0(%arg0: i32) -> (i32, i32, i32) {
    %c0_i32 = arith.constant 0 : i32
    %c0_i32_0 = arith.constant 0 : i32
    %c0_i32_1 = arith.constant 0 : i32
    return %arg0, %c0_i32, %c0_i32_0 : i32, i32, i32
  }
  func.func @transform_1(%arg0: i32) -> (i32, i32, i32) {
    %c0_i32 = arith.constant 0 : i32
    %c0_i32_0 = arith.constant 0 : i32
    %c0_i32_1 = arith.constant 0 : i32
    return %arg0, %c0_i32, %c0_i32_0 : i32, i32, i32
  }
  func.func @transform_2(%arg0: i32) -> (i32, i32) {
    %c0_i32 = arith.constant 0 : i32
    %c0_i32_0 = arith.constant 0 : i32
    %c0_i32_1 = arith.constant 0 : i32
    return %c0_i32, %c0_i32_0 : i32, i32
  }
  func.func @transform_3(%arg0: i32) -> (i32, i32, i32) {
    %c0_i32 = arith.constant 0 : i32
    %c0_i32_0 = arith.constant 0 : i32
    %c0_i32_1 = arith.constant 0 : i32
    return %arg0, %c0_i32, %c0_i32_0 : i32, i32, i32
  }
}

</mosaic_0001>

<llo_original>
// kernel: mss_loss.3
$region0: #{mss_loss.3}
  #allocation0 [shape = 'u32[]', space=smem, size = 0x4, offset = 0x4, fixed_abs, tag = 'smem constant byte address 0x4 - core index']
  #allocation1 [shape = 'u32[72,128]{1,0:T(1,128)}', space=vmem, size = 0x9000, scoped, tag = 'internal scratch']
  %s0 = inlined_call_operand.vmem [shape: bf16[4,35,32], index: 0, kind: input, shape index: {}]
  %s1 = inlined_call_operand.vmem [shape: bf16[4,35,32], index: 1, kind: input, shape index: {}]
  %s2 = inlined_call_operand.vmem [shape: bf16[128,256], index: 2, kind: input, shape index: {}]
  %s3 = inlined_call_operand.vmem [shape: f32[4,3,128], index: 3, kind: output, shape index: {}]
  %s4 = sld [smem:[#allocation0]]
  $region45: #{mss_loss.3} parent=0
    _
  %s6 = ssub.s32 1, %s4
  %s7 = scalar_select 0, %s6, %s4
  loop: start=0, step=1, limit=4
  $region2: #{mss_loss.3} parent=0 // loop_pre_header
    _
  $region3: #{mss_loss.3} parent=0 // loop_header
    %s9 = sphi 0, %s13
    %p10 = scmp.ge.s32.totalorder %s9, 4
    %s19 = sphi 0, %s21
    %s22 = sphi 0, %s19
    %s23 = sphi 0, %s22
    %s39 = sphi 0, %s23
    %s45 = sphi 0, %s47
    %s48 = sphi 0, %s45
    %s49 = sphi 0, %s48
    %s65 = sphi 0, %s49
    %s69 = sphi 0, %s69
    %s71 = sphi 0, %s69
    %s72 = sphi 0, %s71
    %s86 = sphi 0, %s72
    %s92 = sphi 0, %s94
    %s95 = sphi 0, %s92
    %s96 = sphi 0, %s95
    %s112 = sphi 0, %s96
  $region4: #{mss_loss.3} parent=0 // loop_header_branch
    %12 = sbr.rel (%p10) target = $region8
  $region5: #{mss_loss.3} parent=0 // loop_body
    %s14 = ssub.s32 %s9, 1
    %s15 = ssub.s32 %s9, 2
    %s16 = sadd.s32 %s9, 1
    %s17 = ssub.s32 %s9, %s16
    %p18 = scmp.eq.s32.totalorder %s17, 0
    %s20 = sadd.s32 %s19, 1
    %s21 = scalar_select %p18, %s19, %s20
    %p24 = pneg %p18
    %p25 = scmp.eq.s32.totalorder %s9, 1
    %p26 = por %p24, %p25
    %p27 = scmp.ne.s32.totalorder %s19, %s22
    %p28 = scmp.eq.s32.totalorder %s9, 0
    %p29 = por %p27, %p28
    %p30 = scmp.ne.s32.totalorder %s19, %s22
    %p31 = scmp.eq.s32.totalorder %s14, 1
    %p32 = por %p30, %p31
    %p33 = scmp.ne.s32.totalorder %s22, %s23
    %p34 = scmp.eq.s32.totalorder %s14, 0
    %p35 = por %p33, %p34
    %p36 = scmp.ne.s32.totalorder %s22, %s23
    %p37 = scmp.eq.s32.totalorder %s15, 1
    %p38 = por %p36, %p37
    %p40 = scmp.ne.s32.totalorder %s23, %s39
    %p41 = scmp.eq.s32.totalorder %s15, 0
    %p42 = por %p40, %p41
    %s43 = ssub.s32 %s9, %s16
    %p44 = scmp.eq.s32.totalorder %s43, 0
    %s46 = sadd.s32 %s45, 1
    %s47 = scalar_select %p44, %s45, %s46
    %p50 = pneg %p44
    %p51 = scmp.eq.s32.totalorder %s9, 1
    %p52 = por %p50, %p51
    %p53 = scmp.ne.s32.totalorder %s45, %s48
    %p54 = scmp.eq.s32.totalorder %s9, 0
    %p55 = por %p53, %p54
    %p56 = scmp.ne.s32.totalorder %s45, %s48
    %p57 = scmp.eq.s32.totalorder %s14, 1
    %p58 = por %p56, %p57
    %p59 = scmp.ne.s32.totalorder %s48, %s49
    %p60 = scmp.eq.s32.totalorder %s14, 0
    %p61 = por %p59, %p60
    %p62 = scmp.ne.s32.totalorder %s48, %s49
    %p63 = scmp.eq.s32.totalorder %s15, 1
    %p64 = por %p62, %p63
    %p66 = scmp.ne.s32.totalorder %s49, %s65
    %p67 = scmp.eq.s32.totalorder %s15, 0
    %p68 = por %p66, %p67
    %s70 = sadd.s32 %s69, 1
    %p73 = scmp.eq.s32.totalorder %s9, 1
    %p74 = scmp.ne.s32.totalorder %s69, %s71
    %p75 = scmp.eq.s32.totalorder %s9, 0
    %p76 = por %p74, %p75
    %p77 = scmp.ne.s32.totalorder %s69, %s71
    %p78 = scmp.eq.s32.totalorder %s14, 1
    %p79 = por %p77, %p78
    %p80 = scmp.ne.s32.totalorder %s71, %s72
    %p81 = scmp.eq.s32.totalorder %s14, 0
    %p82 = por %p80, %p81
    %p83 = scmp.ne.s32.totalorder %s71, %s72
    %p84 = scmp.eq.s32.totalorder %s15, 1
    %p85 = por %p83, %p84
    %p87 = scmp.ne.s32.totalorder %s72, %s86
    %p88 = scmp.eq.s32.totalorder %s15, 0
    %p89 = por %p87, %p88
    %s90 = ssub.s32 %s9, %s16
    %p91 = scmp.eq.s32.totalorder %s90, 0
    %s93 = sadd.s32 %s92, 1
    %s94 = scalar_select %p91, %s92, %s93
    %p97 = pneg %p91
    %p98 = scmp.eq.s32.totalorder %s9, 1
    %p99 = por %p97, %p98
    %p100 = scmp.ne.s32.totalorder %s92, %s95
    %p101 = scmp.eq.s32.totalorder %s9, 0
    %p102 = por %p100, %p101
    %p103 = scmp.ne.s32.totalorder %s92, %s95
    %p104 = scmp.eq.s32.totalorder %s14, 1
    %p105 = por %p103, %p104
    %p106 = scmp.ne.s32.totalorder %s95, %s96
    %p107 = scmp.eq.s32.totalorder %s14, 0
    %p108 = por %p106, %p107
    %p109 = scmp.ne.s32.totalorder %s95, %s96
    %p110 = scmp.eq.s32.totalorder %s15, 1
    %p111 = por %p109, %p110
    %p113 = scmp.ne.s32.totalorder %s96, %s112
    %p114 = scmp.eq.s32.totalorder %s15, 0
    %p115 = por %p113, %p114
    %p116 = scmp.le.s32.totalorder 1, %s9
    %p117 = scmp.lt.s32.totalorder %s9, 3
    %p118 = pnand %p116, %p117
    %p119 = pneg %p118
    // Predicated region
    $region9: #{mss_loss.3} parent=5 // pred_check
      _
    $region10: #{mss_loss.3} parent=5 // pred_check_branch
      %121 = sbr.rel (%p118) target = $region12
    $region11: #{mss_loss.3} parent=5 // pred_region
      %s122 = ssub.s32 %s9, 1
      // Predicated region
      $region13: #{mss_loss.3} parent=11 // pred_check
        %p123 = pneg %p82
      $region14: #{mss_loss.3} parent=11 // pred_check_branch
        %125 = sbr.rel (%p123) target = $region16
      $region15: #{mss_loss.3} parent=11 // pred_region
        _
      $region16: #{mss_loss.3} parent=11 // pred_fallthru
        _
    $region12: #{mss_loss.3} parent=5 // pred_fallthru
      _
    %p126 = scmp.lt.s32.totalorder %s9, 2
    // Predicated region
    $region17: #{mss_loss.3} parent=5 // pred_check
      %p127 = pneg %p126
    $region18: #{mss_loss.3} parent=5 // pred_check_branch
      %129 = sbr.rel (%p127) target = $region20
    $region19: #{mss_loss.3} parent=5 // pred_region
      // Predicated region
      $region21: #{mss_loss.3} parent=19 // pred_check
        %p130 = pneg %p29
      $region22: #{mss_loss.3} parent=19 // pred_check_branch
        %132 = sbr.rel (%p130) target = $region24
      $region23: #{mss_loss.3} parent=19 // pred_region
        %s133 = smul.u32 2, %s9
        %p134 = scmp.lt.s32.totalorder %s133, 3
        %s135 = scalar_select %p134, %s133, 3
        %s136 = smul.addr %s135, 5
        %s137 = smul.addr %s136, 4
        %s138 = scalar_lea.vmem %s0, %s137
        %s139 = smul.u32 2, %s9
      $region24: #{mss_loss.3} parent=19 // pred_fallthru
        _
      // Predicated region
      $region25: #{mss_loss.3} parent=19 // pred_check
        %p140 = pneg %p55
      $region26: #{mss_loss.3} parent=19 // pred_check_branch
        %142 = sbr.rel (%p140) target = $region28
      $region27: #{mss_loss.3} parent=19 // pred_region
        %s143 = smul.u32 2, %s9
        %p144 = scmp.lt.s32.totalorder %s143, 3
        %s145 = scalar_select %p144, %s143, 3
        %s146 = smul.addr %s145, 5
        %s147 = smul.addr %s146, 4
        %s148 = scalar_lea.vmem %s1, %s147
        %s149 = smul.u32 2, %s9
      $region28: #{mss_loss.3} parent=19 // pred_fallthru
        _
    $region20: #{mss_loss.3} parent=5 // pred_fallthru
      _
    %p150 = scmp.le.s32.totalorder 1, %s9
    %p151 = scmp.lt.s32.totalorder %s9, 3
    %p152 = pnand %p150, %p151
    %p153 = pneg %p152
    // Predicated region
    $region29: #{mss_loss.3} parent=5 // pred_check
      _
    $region30: #{mss_loss.3} parent=5 // pred_check_branch
      %155 = sbr.rel (%p152) target = $region32
    $region31: #{mss_loss.3} parent=5 // pred_region
      %s156 = ssub.s32 %s9, 1
      %s157 = smul.u32 2, %s14
      %p158 = scmp.lt.s32.totalorder %s157, 3
      %s159 = scalar_select %p158, %s157, 3
      %s160 = smul.addr %s159, 5
      %s161 = smul.addr %s160, 4
      %s162 = scalar_lea.vmem %s0, %s161
      %p163 = pneg %p35
      %p164 = pneg %p32
      %s165 = smul.u32 2, %s14
      %p166 = scmp.lt.s32.totalorder %s165, 3
      %s167 = scalar_select %p166, %s165, 3
      %s168 = smul.addr %s167, 5
      %s169 = smul.addr %s168, 4
      %s170 = scalar_lea.vmem %s1, %s169
      %p171 = pneg %p61
      %p172 = pneg %p58
      %p173 = pneg %p82
      %p174 = pneg %p79
      %p175 = pneg %p108
      %p176 = pneg %p105
      %s177 = smul.u32 2, %s14
      %p178 = scmp.lt.s32.totalorder %s177, 3
      %s179 = scalar_select %p178, %s177, 3
      %s180 = smul.addr %s179, 4
      %s181 = scalar_lea.vmem %s3, %s180
      %s182 = smul.u32 2, %s14
      %p183 = scmp.lt.s32.totalorder %s182, 3
      %s184 = scalar_select %p183, %s182, 3
      %s185 = smul.addr %s184, 5
      %s186 = smul.addr %s185, 4
      %s187 = scalar_lea.vmem %s0, %s186
      %s188 = smul.u32 2, %s14
      %s189 = smul.u32 2, %s14
      %p190 = scmp.lt.s32.totalorder %s189, 3
      %s191 = scalar_select %p190, %s189, 3
      %s192 = smul.addr %s191, 5
      %s193 = smul.addr %s192, 4
      %s194 = scalar_lea.vmem %s1, %s193
      %s195 = smul.u32 2, %s14
      %s196 = smul.u32 2, %s14
      %p197 = scmp.lt.s32.totalorder %s196, 3
      %s198 = scalar_select %p197, %s196, 3
      %s199 = smul.addr %s198, 4
      %s200 = scalar_lea.vmem %s3, %s199
      %s201 = smul.u32 2, %s14
      %v202 = vld [vmem:[%s2] sm:$0xff]
      %v203 = vld [vmem:[%s2 + $0x8] sm:$0xff]
      %v204 = vld [vmem:[%s2 + $0x10] sm:$0xff]
      %v205 = vld [vmem:[%s2 + $0x18] sm:$0xff]
      %v206 = vld [vmem:[%s2 + $0x20] sm:$0xff]
      %v207 = vld [vmem:[%s2 + $0x28] sm:$0xff]
      %v208 = vld [vmem:[%s2 + $0x30] sm:$0xff]
      %v209 = vld [vmem:[%s2 + $0x38] sm:$0xff]
      %v210 = vld [vmem:[%s2 + $0x40] sm:$0xff]
      %v211 = vld [vmem:[%s2 + $0x48] sm:$0xff]
      %v212 = vld [vmem:[%s2 + $0x50] sm:$0xff]
      %v213 = vld [vmem:[%s2 + $0x58] sm:$0xff]
      %v214 = vld [vmem:[%s2 + $0x60] sm:$0xff]
      %v215 = vld [vmem:[%s2 + $0x68] sm:$0xff]
      %v216 = vld [vmem:[%s2 + $0x70] sm:$0xff]
      %v217 = vld [vmem:[%s2 + $0x78] sm:$0xff]
      %v218 = vld [vmem:[%s187] sm:$0xf]
      %v219 = vld [vmem:[%s187 + $0x4] sm:$0xf]
      %v220 = vld [vmem:[%s187 + $0x8] sm:$0xf]
      %v221 = vld [vmem:[%s187 + $0xc] sm:$0xf]
      %v222 = vld [vmem:[%s187 + $0x14] sm:$0xf]
      %v223 = vld [vmem:[%s187 + $0x18] sm:$0xf]
      %v224 = vld [vmem:[%s187 + $0x1c] sm:$0xf]
      %v225 = vld [vmem:[%s187 + $0x20] sm:$0xf]
      %v226 = vld [vmem:[%s187 + $0x10] sm:$0x1]
      %v227 = vld [vmem:[%s187 + $0x24] sm:$0x1]
      %v228 = vld [vmem:[%s187] sm:$0xe]
      %v229 = vld [vmem:[%s187 + $0x14] sm:$0xe]
      %v230 = vld [vmem:[%s187 + $0x10] sm:$0x3]
      %v231 = vld [vmem:[%s187 + $0x24] sm:$0x3]
      %v240 = vunpack.c.l.b16 %v218
      %v241 = vunpack.c.l.b16 %v219
      %v242 = vunpack.c.l.b16 %v220
      %v243 = vunpack.c.l.b16 %v221
      %v244 = vunpack.c.l.b16 %v222
      %v245 = vunpack.c.l.b16 %v223
      %v246 = vunpack.c.l.b16 %v224
      %v247 = vunpack.c.l.b16 %v225
      %v248 = vpack.c.b16 %v241, %v240
      %v249 = vpack.c.b16 %v243, %v242
      %v250 = vpack.c.b16 %v245, %v244
      %v251 = vpack.c.b16 %v247, %v246
      %v254 = vunpack.c.l.b16 %v226
      %v255 = vunpack.c.l.b16 %v227
      %v256 = vpack.c.b16 %v254, %v254
      %v257 = vpack.c.b16 %v255, %v255
      %vm258 = vsmask.f32 7424
      %v260 = vshrl.u32 %v248, 16
      %v262 = vshll.u32 %v248, 16
      %v264 = vrot.slane %v262, 1
      %v265 = vor.u32 %v260, %v264
      %v267 = vshll.u32 %v249, 16
      %v269 = vrot.slane %v267, 1
      %v270 = vsel %vm258, %v265, %v269
      %v271 = vshrl.u32 %v249, 16
      %v273 = vor.u32 %v271, %v269
      %v275 = vshll.u32 %v256, 16
      %v277 = vrot.slane %v275, 1
      %v278 = vsel %vm258, %v273, %v277
      %v280 = vshrl.u32 %v250, 16
      %v282 = vshll.u32 %v250, 16
      %v284 = vrot.slane %v282, 1
      %v285 = vor.u32 %v280, %v284
      %v287 = vshll.u32 %v251, 16
      %v289 = vrot.slane %v287, 1
      %v290 = vsel %vm258, %v285, %v289
      %v291 = vshrl.u32 %v251, 16
      %v293 = vor.u32 %v291, %v289
      %v295 = vshll.u32 %v257, 16
      %v297 = vrot.slane %v295, 1
      %v298 = vsel %vm258, %v293, %v297
      %299 = vrot.lane.b32.xlu0 %v270, 32
      %v300 = vpop.permute.xlu0 %299
      %301 = vrot.lane.b32.xlu0 %v278, 32
      %v302 = vpop.permute.xlu0 %301
      %303 = vrot.lane.b32.xlu0 %v290, 32
      %v304 = vpop.permute.xlu0 %303
      %305 = vrot.lane.b32.xlu0 %v298, 32
      %v306 = vpop.permute.xlu0 %305
      %v309 = vunpack.c.l.b16 %v228
      %v310 = vunpack.c.l.b16 %v229
      %v311 = vpack.c.b16 %v241, %v309
      %v312 = vpack.c.b16 %v245, %v310
      %vm313 = vcmask 1046528
      %v314 = vrot.slane %v311, 1
      %v315 = vrot.slane %v249, 1
      %v316 = vsel %vm313, %v314, %v315
      %v317 = vrot.slane %v256, 1
      %v318 = vsel %vm313, %v315, %v317
      %v319 = vrot.slane %v312, 1
      %v320 = vrot.slane %v251, 1
      %v321 = vsel %vm313, %v319, %v320
      %v322 = vrot.slane %v257, 1
      %v323 = vsel %vm313, %v320, %v322
      %324 = vrot.lane.b32.xlu0 %v316, 64
      %v325 = vpop.permute.xlu0 %324
      %326 = vrot.lane.b32.xlu0 %v318, 64
      %v327 = vpop.permute.xlu0 %326
      %328 = vrot.lane.b32.xlu0 %v321, 64
      %v329 = vpop.permute.xlu0 %328
      %330 = vrot.lane.b32.xlu0 %v323, 64
      %v331 = vpop.permute.xlu0 %330
      %v334 = vunpack.c.l.b16 %v230
      %v335 = vunpack.c.l.b16 %v231
      %v336 = vpack.c.b16 %v334, %v334
      %v337 = vpack.c.b16 %v335, %v335
      %vm338 = vsmask.f32 6400
      %v340 = vshrl.u32 %v311, 16
      %v342 = vrot.slane %v340, 1
      %v343 = vshll.u32 %v311, 16
      %v345 = vrot.slane %v343, 2
      %v346 = vor.u32 %v342, %v345
      %v347 = vrot.slane %v271, 1
      %v348 = vrot.slane %v267, 2
      %v349 = vor.u32 %v347, %v348
      %v350 = vsel %vm338, %v346, %v349
      %v352 = vshrl.u32 %v336, 16
      %v354 = vrot.slane %v352, 1
      %v355 = vshll.u32 %v336, 16
      %v357 = vrot.slane %v355, 2
      %v358 = vor.u32 %v354, %v357
      %v359 = vsel %vm338, %v349, %v358
      %v361 = vshrl.u32 %v312, 16
      %v363 = vrot.slane %v361, 1
      %v364 = vshll.u32 %v312, 16
      %v366 = vrot.slane %v364, 2
      %v367 = vor.u32 %v363, %v366
      %v368 = vrot.slane %v291, 1
      %v369 = vrot.slane %v287, 2
      %v370 = vor.u32 %v368, %v369
      %v371 = vsel %vm338, %v367, %v370
      %v373 = vshrl.u32 %v337, 16
      %v375 = vrot.slane %v373, 1
      %v376 = vshll.u32 %v337, 16
      %v378 = vrot.slane %v376, 2
      %v379 = vor.u32 %v375, %v378
      %v380 = vsel %vm338, %v370, %v379
      %381 = vrot.lane.b32.xlu0 %v350, 96
      %v382 = vpop.permute.xlu0 %381
      %383 = vrot.lane.b32.xlu0 %v359, 96
      %v384 = vpop.permute.xlu0 %383
      %385 = vrot.lane.b32.xlu0 %v371, 96
      %v386 = vpop.permute.xlu0 %385
      %387 = vrot.lane.b32.xlu0 %v380, 96
      %v388 = vpop.permute.xlu0 %387
      %vm389 = vcmask 261120
      %v391 = vsel %vm389, %v248, %v300
      %v393 = vsel %vm389, %v249, %v302
      %v395 = vsel %vm389, %v250, %v304
      %v397 = vsel %vm389, %v251, %v306
      %vm398 = vcmask 523264
      %v400 = vsel %vm398, %v391, %v325
      %v402 = vsel %vm398, %v393, %v327
      %v404 = vsel %vm398, %v395, %v329
      %v406 = vsel %vm398, %v397, %v331
      %vm407 = vcmask 785408
      %v409 = vsel %vm407, %v400, %v382
      %v412 = vsel %vm407, %v402, %v384
      %v415 = vsel %vm407, %v404, %v386
      %v418 = vsel %vm407, %v406, %v388
      %v420 = vld [vmem:[%s194] sm:$0xf]
      %v421 = vld [vmem:[%s194 + $0x4] sm:$0xf]
      %v422 = vld [vmem:[%s194 + $0x8] sm:$0xf]
      %v423 = vld [vmem:[%s194 + $0xc] sm:$0xf]
      %v424 = vld [vmem:[%s194 + $0x14] sm:$0xf]
      %v425 = vld [vmem:[%s194 + $0x18] sm:$0xf]
      %v426 = vld [vmem:[%s194 + $0x1c] sm:$0xf]
      %v427 = vld [vmem:[%s194 + $0x20] sm:$0xf]
      %v428 = vld [vmem:[%s194 + $0x10] sm:$0x1]
      %v429 = vld [vmem:[%s194 + $0x24] sm:$0x1]
      %v430 = vld [vmem:[%s194] sm:$0xe]
      %v431 = vld [vmem:[%s194 + $0x14] sm:$0xe]
      %v432 = vld [vmem:[%s194 + $0x10] sm:$0x3]
      %v433 = vld [vmem:[%s194 + $0x24] sm:$0x3]
      %v442 = vunpack.c.l.b16 %v420
      %v443 = vunpack.c.l.b16 %v421
      %v444 = vunpack.c.l.b16 %v422
      %v445 = vunpack.c.l.b16 %v423
      %v446 = vunpack.c.l.b16 %v424
      %v447 = vunpack.c.l.b16 %v425
      %v448 = vunpack.c.l.b16 %v426
      %v449 = vunpack.c.l.b16 %v427
      %v450 = vpack.c.b16 %v443, %v442
      %v451 = vpack.c.b16 %v445, %v444
      %v452 = vpack.c.b16 %v447, %v446
      %v453 = vpack.c.b16 %v449, %v448
      %v456 = vunpack.c.l.b16 %v428
      %v457 = vunpack.c.l.b16 %v429
      %v458 = vpack.c.b16 %v456, %v456
      %v459 = vpack.c.b16 %v457, %v457
      %v461 = vshrl.u32 %v450, 16
      %v463 = vshll.u32 %v450, 16
      %v465 = vrot.slane %v463, 1
      %v466 = vor.u32 %v461, %v465
      %v468 = vshll.u32 %v451, 16
      %v470 = vrot.slane %v468, 1
      %v471 = vsel %vm258, %v466, %v470
      %v472 = vshrl.u32 %v451, 16
      %v474 = vor.u32 %v472, %v470
      %v476 = vshll.u32 %v458, 16
      %v478 = vrot.slane %v476, 1
      %v479 = vsel %vm258, %v474, %v478
      %v481 = vshrl.u32 %v452, 16
      %v483 = vshll.u32 %v452, 16
      %v485 = vrot.slane %v483, 1
      %v486 = vor.u32 %v481, %v485
      %v488 = vshll.u32 %v453, 16
      %v490 = vrot.slane %v488, 1
      %v491 = vsel %vm258, %v486, %v490
      %v492 = vshrl.u32 %v453, 16
      %v494 = vor.u32 %v492, %v490
      %v496 = vshll.u32 %v459, 16
      %v498 = vrot.slane %v496, 1
      %v499 = vsel %vm258, %v494, %v498
      %500 = vrot.lane.b32.xlu0 %v471, 32
      %v501 = vpop.permute.xlu0 %500
      %502 = vrot.lane.b32.xlu0 %v479, 32
      %v503 = vpop.permute.xlu0 %502
      %504 = vrot.lane.b32.xlu0 %v491, 32
      %v505 = vpop.permute.xlu0 %504
      %506 = vrot.lane.b32.xlu0 %v499, 32
      %v507 = vpop.permute.xlu0 %506
      %v510 = vunpack.c.l.b16 %v430
      %v511 = vunpack.c.l.b16 %v431
      %v512 = vpack.c.b16 %v443, %v510
      %v513 = vpack.c.b16 %v447, %v511
      %v514 = vrot.slane %v512, 1
      %v515 = vrot.slane %v451, 1
      %v516 = vsel %vm313, %v514, %v515
      %v517 = vrot.slane %v458, 1
      %v518 = vsel %vm313, %v515, %v517
      %v519 = vrot.slane %v513, 1
      %v520 = vrot.slane %v453, 1
      %v521 = vsel %vm313, %v519, %v520
      %v522 = vrot.slane %v459, 1
      %v523 = vsel %vm313, %v520, %v522
      %524 = vrot.lane.b32.xlu0 %v516, 64
      %v525 = vpop.permute.xlu0 %524
      %526 = vrot.lane.b32.xlu0 %v518, 64
      %v527 = vpop.permute.xlu0 %526
      %528 = vrot.lane.b32.xlu0 %v521, 64
      %v529 = vpop.permute.xlu0 %528
      %530 = vrot.lane.b32.xlu0 %v523, 64
      %v531 = vpop.permute.xlu0 %530
      %v534 = vunpack.c.l.b16 %v432
      %v535 = vunpack.c.l.b16 %v433
      %v536 = vpack.c.b16 %v534, %v534
      %v537 = vpack.c.b16 %v535, %v535
      %v539 = vshrl.u32 %v512, 16
      %v541 = vrot.slane %v539, 1
      %v542 = vshll.u32 %v512, 16
      %v544 = vrot.slane %v542, 2
      %v545 = vor.u32 %v541, %v544
      %v546 = vrot.slane %v472, 1
      %v547 = vrot.slane %v468, 2
      %v548 = vor.u32 %v546, %v547
      %v549 = vsel %vm338, %v545, %v548
      %v551 = vshrl.u32 %v536, 16
      %v553 = vrot.slane %v551, 1
      %v554 = vshll.u32 %v536, 16
      %v556 = vrot.slane %v554, 2
      %v557 = vor.u32 %v553, %v556
      %v558 = vsel %vm338, %v548, %v557
      %v560 = vshrl.u32 %v513, 16
      %v562 = vrot.slane %v560, 1
      %v563 = vshll.u32 %v513, 16
      %v565 = vrot.slane %v563, 2
      %v566 = vor.u32 %v562, %v565
      %v567 = vrot.slane %v492, 1
      %v568 = vrot.slane %v488, 2
      %v569 = vor.u32 %v567, %v568
      %v570 = vsel %vm338, %v566, %v569
      %v572 = vshrl.u32 %v537, 16
      %v574 = vrot.slane %v572, 1
      %v575 = vshll.u32 %v537, 16
      %v577 = vrot.slane %v575, 2
      %v578 = vor.u32 %v574, %v577
      %v579 = vsel %vm338, %v569, %v578
      %580 = vrot.lane.b32.xlu0 %v549, 96
      %v581 = vpop.permute.xlu0 %580
      %582 = vrot.lane.b32.xlu0 %v558, 96
      %v583 = vpop.permute.xlu0 %582
      %584 = vrot.lane.b32.xlu0 %v570, 96
      %v585 = vpop.permute.xlu0 %584
      %586 = vrot.lane.b32.xlu0 %v579, 96
      %v587 = vpop.permute.xlu0 %586
      %v589 = vsel %vm389, %v450, %v501
      %v591 = vsel %vm389, %v451, %v503
      %v593 = vsel %vm389, %v452, %v505
      %v595 = vsel %vm389, %v453, %v507
      %v597 = vsel %vm398, %v589, %v525
      %v599 = vsel %vm398, %v591, %v527
      %v601 = vsel %vm398, %v593, %v529
      %v603 = vsel %vm398, %v595, %v531
      %v605 = vsel %vm407, %v597, %v581
      %v608 = vsel %vm407, %v599, %v583
      %v611 = vsel %vm407, %v601, %v585
      %v614 = vsel %vm407, %v603, %v587
      %v632 = vunpack.c.l.b16 %v202
      %v633 = vunpack.c.h.b16 %v202
      %v634 = vunpack.c.l.b16 %v203
      %v635 = vunpack.c.h.b16 %v203
      %v636 = vunpack.c.l.b16 %v204
      %v637 = vunpack.c.h.b16 %v204
      %v638 = vunpack.c.l.b16 %v205
      %v639 = vunpack.c.h.b16 %v205
      %v640 = vunpack.c.l.b16 %v206
      %v641 = vunpack.c.h.b16 %v206
      %v642 = vunpack.c.l.b16 %v207
      %v643 = vunpack.c.h.b16 %v207
      %v644 = vunpack.c.l.b16 %v208
      %v645 = vunpack.c.h.b16 %v208
      %v646 = vunpack.c.l.b16 %v209
      %v647 = vunpack.c.h.b16 %v209
      %v648 = vunpack.c.l.b16 %v210
      %v649 = vunpack.c.h.b16 %v210
      %v650 = vunpack.c.l.b16 %v211
      %v651 = vunpack.c.h.b16 %v211
      %v652 = vunpack.c.l.b16 %v212
      %v653 = vunpack.c.h.b16 %v212
      %v654 = vunpack.c.l.b16 %v213
      %v655 = vunpack.c.h.b16 %v213
      %v656 = vunpack.c.l.b16 %v214
      %v657 = vunpack.c.h.b16 %v214
      %v658 = vunpack.c.l.b16 %v215
      %v659 = vunpack.c.h.b16 %v215
      %v660 = vunpack.c.l.b16 %v216
      %v661 = vunpack.c.h.b16 %v216
      %v662 = vunpack.c.l.b16 %v217
      %v663 = vunpack.c.h.b16 %v217
      %v664 = vpack.c.b16 %v634, %v632
      %v665 = vpack.c.b16 %v635, %v633
      %v666 = vpack.c.b16 %v638, %v636
      %v667 = vpack.c.b16 %v639, %v637
      %v668 = vpack.c.b16 %v642, %v640
      %v669 = vpack.c.b16 %v643, %v641
      %v670 = vpack.c.b16 %v646, %v644
      %v671 = vpack.c.b16 %v647, %v645
      %v672 = vpack.c.b16 %v650, %v648
      %v673 = vpack.c.b16 %v651, %v649
      %v674 = vpack.c.b16 %v654, %v652
      %v675 = vpack.c.b16 %v655, %v653
      %v676 = vpack.c.b16 %v658, %v656
      %v677 = vpack.c.b16 %v659, %v657
      %v678 = vpack.c.b16 %v662, %v660
      %v679 = vpack.c.b16 %v663, %v661
      %696 = vmatpush.bf16.msra.mxu0 %v678
      %697 = vmatpush.bf16.msra.mxu0 %v676
      %698 = vmatpush.bf16.msra.mxu0 %v674
      %699 = vmatpush.bf16.msra.mxu0 %v672
      %700 = vmatpush.bf16.msra.mxu0 %v670
      %701 = vmatpush.bf16.msra.mxu0 %v668
      %702 = vmatpush.bf16.msra.mxu0 %v666
      %703 = vmatpush.bf16.msra.mxu0 %v664
      %704 = vmatmul.bf16.gmra.mxu0 %v409
      %v705 = vpop.f32.mrf.mxu0
      %v706 = vadd.f32 0.0, %v705
      %v707 = vpop.f32.mrf.mxu0
      %v708 = vadd.f32 0.0, %v707
      %709 = vmatmul.bf16.gmra.mxu0 %v412
      %v710 = vpop.f32.mrf.mxu0
      %v711 = vadd.f32 0.0, %v710
      %v712 = vpop.f32.mrf.mxu0
      %v713 = vadd.f32 0.0, %v712
      %714 = vmatmul.bf16.gmra.mxu0 %v415
      %v715 = vpop.f32.mrf.mxu0
      %v716 = vadd.f32 0.0, %v715
      %v717 = vpop.f32.mrf.mxu0
      %v718 = vadd.f32 0.0, %v717
      %719 = vmatmul.bf16.gmra.mxu0 %v418
      %v720 = vpop.f32.mrf.mxu0
      %v721 = vadd.f32 0.0, %v720
      %v722 = vpop.f32.mrf.mxu0
      %v723 = vadd.f32 0.0, %v722
      %724 = vmatmul.bf16.gmra.mxu0 %v605
      %v725 = vpop.f32.mrf.mxu0
      %v726 = vadd.f32 0.0, %v725
      %v727 = vpop.f32.mrf.mxu0
      %v728 = vadd.f32 0.0, %v727
      %729 = vmatmul.bf16.gmra.mxu0 %v608
      %v730 = vpop.f32.mrf.mxu0
      %v731 = vadd.f32 0.0, %v730
      %v732 = vpop.f32.mrf.mxu0
      %v733 = vadd.f32 0.0, %v732
      %734 = vmatmul.bf16.gmra.mxu0 %v611
      %v735 = vpop.f32.mrf.mxu0
      %v736 = vadd.f32 0.0, %v735
      %v737 = vpop.f32.mrf.mxu0
      %v738 = vadd.f32 0.0, %v737
      %739 = vmatmul.bf16.gmra.mxu0 %v614
      %v740 = vpop.f32.mrf.mxu0
      %v741 = vadd.f32 0.0, %v740
      %v742 = vpop.f32.mrf.mxu0
      %v743 = vadd.f32 0.0, %v742
      %744 = vdwg.mxu0
      %745 = vmatpush.bf16.msra.mxu0 %v679
      %746 = vmatpush.bf16.msra.mxu0 %v677
      %747 = vmatpush.bf16.msra.mxu0 %v675
      %748 = vmatpush.bf16.msra.mxu0 %v673
      %749 = vmatpush.bf16.msra.mxu0 %v671
      %750 = vmatpush.bf16.msra.mxu0 %v669
      %751 = vmatpush.bf16.msra.mxu0 %v667
      %752 = vmatpush.bf16.msra.mxu0 %v665
      %753 = vmatmul.bf16.gmra.mxu0 %v409
      %v754 = vpop.f32.mrf.mxu0
      %v755 = vadd.f32 0.0, %v754
      %v756 = vpop.f32.mrf.mxu0
      %v757 = vadd.f32 0.0, %v756
      %758 = vmatmul.bf16.gmra.mxu0 %v412
      %v759 = vpop.f32.mrf.mxu0
      %v760 = vadd.f32 0.0, %v759
      %v761 = vpop.f32.mrf.mxu0
      %v762 = vadd.f32 0.0, %v761
      %763 = vmatmul.bf16.gmra.mxu0 %v415
      %v764 = vpop.f32.mrf.mxu0
      %v765 = vadd.f32 0.0, %v764
      %v766 = vpop.f32.mrf.mxu0
      %v767 = vadd.f32 0.0, %v766
      %768 = vmatmul.bf16.gmra.mxu0 %v418
      %v769 = vpop.f32.mrf.mxu0
      %v770 = vadd.f32 0.0, %v769
      %v771 = vpop.f32.mrf.mxu0
      %v772 = vadd.f32 0.0, %v771
      %773 = vmatmul.bf16.gmra.mxu0 %v605
      %v774 = vpop.f32.mrf.mxu0
      %v775 = vadd.f32 0.0, %v774
      %v776 = vpop.f32.mrf.mxu0
      %v777 = vadd.f32 0.0, %v776
      %778 = vmatmul.bf16.gmra.mxu0 %v608
      %v779 = vpop.f32.mrf.mxu0
      %v780 = vadd.f32 0.0, %v779
      %v781 = vpop.f32.mrf.mxu0
      %v782 = vadd.f32 0.0, %v781
      %783 = vmatmul.bf16.gmra.mxu0 %v611
      %v784 = vpop.f32.mrf.mxu0
      %v785 = vadd.f32 0.0, %v784
      %v786 = vpop.f32.mrf.mxu0
      %v787 = vadd.f32 0.0, %v786
      %788 = vmatmul.bf16.gmra.mxu0 %v614
      %v789 = vpop.f32.mrf.mxu0
      %v790 = vadd.f32 0.0, %v789
      %v791 = vpop.f32.mrf.mxu0
      %v792 = vadd.f32 0.0, %v791
      %793 = vdwg.mxu0
      %v794 = vmul.f32 %v706, %v706
      %v795 = vmul.f32 %v708, %v708
      %v796 = vmul.f32 %v711, %v711
      %v797 = vmul.f32 %v713, %v713
      %v798 = vmul.f32 %v716, %v716
      %v799 = vmul.f32 %v718, %v718
      %v800 = vmul.f32 %v721, %v721
      %v801 = vmul.f32 %v723, %v723
      %v802 = vmul.f32 %v726, %v726
      %v803 = vmul.f32 %v728, %v728
      %v804 = vmul.f32 %v731, %v731
      %v805 = vmul.f32 %v733, %v733
      %v806 = vmul.f32 %v736, %v736
      %v807 = vmul.f32 %v738, %v738
      %v808 = vmul.f32 %v741, %v741
      %v809 = vmul.f32 %v743, %v743
      %v810 = vmul.f32 %v755, %v755
      %v811 = vmul.f32 %v757, %v757
      %v812 = vmul.f32 %v760, %v760
      %v813 = vmul.f32 %v762, %v762
      %v814 = vmul.f32 %v765, %v765
      %v815 = vmul.f32 %v767, %v767
      %v816 = vmul.f32 %v770, %v770
      %v817 = vmul.f32 %v772, %v772
      %v818 = vmul.f32 %v775, %v775
      %v819 = vmul.f32 %v777, %v777
      %v820 = vmul.f32 %v780, %v780
      %v821 = vmul.f32 %v782, %v782
      %v822 = vmul.f32 %v785, %v785
      %v823 = vmul.f32 %v787, %v787
      %v824 = vmul.f32 %v790, %v790
      %v825 = vmul.f32 %v792, %v792
      %v826 = vadd.f32 %v794, %v810
      %v827 = vadd.f32 %v795, %v811
      %v828 = vadd.f32 %v796, %v812
      %v829 = vadd.f32 %v797, %v813
      %v830 = vadd.f32 %v798, %v814
      %v831 = vadd.f32 %v799, %v815
      %v832 = vadd.f32 %v800, %v816
      %v833 = vadd.f32 %v801, %v817
      %v834 = vadd.f32 %v802, %v818
      %v835 = vadd.f32 %v803, %v819
      %v836 = vadd.f32 %v804, %v820
      %v837 = vadd.f32 %v805, %v821
      %v838 = vadd.f32 %v806, %v822
      %v839 = vadd.f32 %v807, %v823
      %v840 = vadd.f32 %v808, %v824
      %v841 = vadd.f32 %v809, %v825
      %v842 = vrsqrt.pop %v826
      %v843 = vmul.f32 %v842, %v826
      %v844 = vmul.f32 %v843, %v842
      %v845 = vmul.f32 0.5, %v844
      %v846 = vsub.f32 1.5, %v845
      %v847 = vmul.f32 %v842, %v846
      %v848 = vmul.f32 %v826, %v847
      %vm849 = vcmp.eq.f32.partialorder %v826, inf
      %v850 = vsel %vm849, %v826, %v848
      %vm851 = vcmp.eq.f32.partialorder %v826, 0.0
      %v852 = vand.u32 %v826, 2147483648
      %v853 = vsel %vm851, %v852, %v850
      %v854 = vrsqrt.pop %v827
      %v855 = vmul.f32 %v854, %v827
      %v856 = vmul.f32 %v855, %v854
      %v857 = vmul.f32 0.5, %v856
      %v858 = vsub.f32 1.5, %v857
      %v859 = vmul.f32 %v854, %v858
      %v860 = vmul.f32 %v827, %v859
      %vm861 = vcmp.eq.f32.partialorder %v827, inf
      %v862 = vsel %vm861, %v827, %v860
      %vm863 = vcmp.eq.f32.partialorder %v827, 0.0
      %v864 = vand.u32 %v827, 2147483648
      %v865 = vsel %vm863, %v864, %v862
      %v866 = vrsqrt.pop %v828
      %v867 = vmul.f32 %v866, %v828
      %v868 = vmul.f32 %v867, %v866
      %v869 = vmul.f32 0.5, %v868
      %v870 = vsub.f32 1.5, %v869
      %v871 = vmul.f32 %v866, %v870
      %v872 = vmul.f32 %v828, %v871
      %vm873 = vcmp.eq.f32.partialorder %v828, inf
      %v874 = vsel %vm873, %v828, %v872
      %vm875 = vcmp.eq.f32.partialorder %v828, 0.0
      %v876 = vand.u32 %v828, 2147483648
      %v877 = vsel %vm875, %v876, %v874
      %v878 = vrsqrt.pop %v829
      %v879 = vmul.f32 %v878, %v829
      %v880 = vmul.f32 %v879, %v878
      %v881 = vmul.f32 0.5, %v880
      %v882 = vsub.f32 1.5, %v881
      %v883 = vmul.f32 %v878, %v882
      %v884 = vmul.f32 %v829, %v883
      %vm885 = vcmp.eq.f32.partialorder %v829, inf
      %v886 = vsel %vm885, %v829, %v884
      %vm887 = vcmp.eq.f32.partialorder %v829, 0.0
      %v888 = vand.u32 %v829, 2147483648
      %v889 = vsel %vm887, %v888, %v886
      %v890 = vrsqrt.pop %v830
      %v891 = vmul.f32 %v890, %v830
      %v892 = vmul.f32 %v891, %v890
      %v893 = vmul.f32 0.5, %v892
      %v894 = vsub.f32 1.5, %v893
      %v895 = vmul.f32 %v890, %v894
      %v896 = vmul.f32 %v830, %v895
      %vm897 = vcmp.eq.f32.partialorder %v830, inf
      %v898 = vsel %vm897, %v830, %v896
      %vm899 = vcmp.eq.f32.partialorder %v830, 0.0
      %v900 = vand.u32 %v830, 2147483648
      %v901 = vsel %vm899, %v900, %v898
      %v902 = vrsqrt.pop %v831
      %v903 = vmul.f32 %v902, %v831
      %v904 = vmul.f32 %v903, %v902
      %v905 = vmul.f32 0.5, %v904
      %v906 = vsub.f32 1.5, %v905
      %v907 = vmul.f32 %v902, %v906
      %v908 = vmul.f32 %v831, %v907
      %vm909 = vcmp.eq.f32.partialorder %v831, inf
      %v910 = vsel %vm909, %v831, %v908
      %vm911 = vcmp.eq.f32.partialorder %v831, 0.0
      %v912 = vand.u32 %v831, 2147483648
      %v913 = vsel %vm911, %v912, %v910
      %v914 = vrsqrt.pop %v832
      %v915 = vmul.f32 %v914, %v832
      %v916 = vmul.f32 %v915, %v914
      %v917 = vmul.f32 0.5, %v916
      %v918 = vsub.f32 1.5, %v917
      %v919 = vmul.f32 %v914, %v918
      %v920 = vmul.f32 %v832, %v919
      %vm921 = vcmp.eq.f32.partialorder %v832, inf
      %v922 = vsel %vm921, %v832, %v920
      %vm923 = vcmp.eq.f32.partialorder %v832, 0.0
      %v924 = vand.u32 %v832, 2147483648
      %v925 = vsel %vm923, %v924, %v922
      %v926 = vrsqrt.pop %v833
      %v927 = vmul.f32 %v926, %v833
      %v928 = vmul.f32 %v927, %v926
      %v929 = vmul.f32 0.5, %v928
      %v930 = vsub.f32 1.5, %v929
      %v931 = vmul.f32 %v926, %v930
      %v932 = vmul.f32 %v833, %v931
      %vm933 = vcmp.eq.f32.partialorder %v833, inf
      %v934 = vsel %vm933, %v833, %v932
      %vm935 = vcmp.eq.f32.partialorder %v833, 0.0
      %v936 = vand.u32 %v833, 2147483648
      %v937 = vsel %vm935, %v936, %v934
      %v938 = vrsqrt.pop %v834
      %v939 = vmul.f32 %v938, %v834
      %v940 = vmul.f32 %v939, %v938
      %v941 = vmul.f32 0.5, %v940
      %v942 = vsub.f32 1.5, %v941
      %v943 = vmul.f32 %v938, %v942
      %v944 = vmul.f32 %v834, %v943
      %vm945 = vcmp.eq.f32.partialorder %v834, inf
      %v946 = vsel %vm945, %v834, %v944
      %vm947 = vcmp.eq.f32.partialorder %v834, 0.0
      %v948 = vand.u32 %v834, 2147483648
      %v949 = vsel %vm947, %v948, %v946
      %v950 = vrsqrt.pop %v835
      %v951 = vmul.f32 %v950, %v835
      %v952 = vmul.f32 %v951, %v950
      %v953 = vmul.f32 0.5, %v952
      %v954 = vsub.f32 1.5, %v953
      %v955 = vmul.f32 %v950, %v954
      %v956 = vmul.f32 %v835, %v955
      %vm957 = vcmp.eq.f32.partialorder %v835, inf
      %v958 = vsel %vm957, %v835, %v956
      %vm959 = vcmp.eq.f32.partialorder %v835, 0.0
      %v960 = vand.u32 %v835, 2147483648
      %v961 = vsel %vm959, %v960, %v958
      %v962 = vrsqrt.pop %v836
      %v963 = vmul.f32 %v962, %v836
      %v964 = vmul.f32 %v963, %v962
      %v965 = vmul.f32 0.5, %v964
      %v966 = vsub.f32 1.5, %v965
      %v967 = vmul.f32 %v962, %v966
      %v968 = vmul.f32 %v836, %v967
      %vm969 = vcmp.eq.f32.partialorder %v836, inf
      %v970 = vsel %vm969, %v836, %v968
      %vm971 = vcmp.eq.f32.partialorder %v836, 0.0
      %v972 = vand.u32 %v836, 2147483648
      %v973 = vsel %vm971, %v972, %v970
      %v974 = vrsqrt.pop %v837
      %v975 = vmul.f32 %v974, %v837
      %v976 = vmul.f32 %v975, %v974
      %v977 = vmul.f32 0.5, %v976
      %v978 = vsub.f32 1.5, %v977
      %v979 = vmul.f32 %v974, %v978
      %v980 = vmul.f32 %v837, %v979
      %vm981 = vcmp.eq.f32.partialorder %v837, inf
      %v982 = vsel %vm981, %v837, %v980
      %vm983 = vcmp.eq.f32.partialorder %v837, 0.0
      %v984 = vand.u32 %v837, 2147483648
      %v985 = vsel %vm983, %v984, %v982
      %v986 = vrsqrt.pop %v838
      %v987 = vmul.f32 %v986, %v838
      %v988 = vmul.f32 %v987, %v986
      %v989 = vmul.f32 0.5, %v988
      %v990 = vsub.f32 1.5, %v989
      %v991 = vmul.f32 %v986, %v990
      %v992 = vmul.f32 %v838, %v991
      %vm993 = vcmp.eq.f32.partialorder %v838, inf
      %v994 = vsel %vm993, %v838, %v992
      %vm995 = vcmp.eq.f32.partialorder %v838, 0.0
      %v996 = vand.u32 %v838, 2147483648
      %v997 = vsel %vm995, %v996, %v994
      %v998 = vrsqrt.pop %v839
      %v999 = vmul.f32 %v998, %v839
      %v1000 = vmul.f32 %v999, %v998
      %v1001 = vmul.f32 0.5, %v1000
      %v1002 = vsub.f32 1.5, %v1001
      %v1003 = vmul.f32 %v998, %v1002
      %v1004 = vmul.f32 %v839, %v1003
      %vm1005 = vcmp.eq.f32.partialorder %v839, inf
      %v1006 = vsel %vm1005, %v839, %v1004
      %vm1007 = vcmp.eq.f32.partialorder %v839, 0.0
      %v1008 = vand.u32 %v839, 2147483648
      %v1009 = vsel %vm1007, %v1008, %v1006
      %v1010 = vrsqrt.pop %v840
      %v1011 = vmul.f32 %v1010, %v840
      %v1012 = vmul.f32 %v1011, %v1010
      %v1013 = vmul.f32 0.5, %v1012
      %v1014 = vsub.f32 1.5, %v1013
      %v1015 = vmul.f32 %v1010, %v1014
      %v1016 = vmul.f32 %v840, %v1015
      %vm1017 = vcmp.eq.f32.partialorder %v840, inf
      %v1018 = vsel %vm1017, %v840, %v1016
      %vm1019 = vcmp.eq.f32.partialorder %v840, 0.0
      %v1020 = vand.u32 %v840, 2147483648
      %v1021 = vsel %vm1019, %v1020, %v1018
      %v1022 = vrsqrt.pop %v841
      %v1023 = vmul.f32 %v1022, %v841
      %v1024 = vmul.f32 %v1023, %v1022
      %v1025 = vmul.f32 0.5, %v1024
      %v1026 = vsub.f32 1.5, %v1025
      %v1027 = vmul.f32 %v1022, %v1026
      %v1028 = vmul.f32 %v841, %v1027
      %vm1029 = vcmp.eq.f32.partialorder %v841, inf
      %v1030 = vsel %vm1029, %v841, %v1028
      %vm1031 = vcmp.eq.f32.partialorder %v841, 0.0
      %v1032 = vand.u32 %v841, 2147483648
      %v1033 = vsel %vm1031, %v1032, %v1030
      %v1034 = vadd.f32 %v853, 1e-07
      %v1035 = vadd.f32 %v865, 1e-07
      %v1036 = vadd.f32 %v877, 1e-07
      %v1037 = vadd.f32 %v889, 1e-07
      %v1038 = vadd.f32 %v901, 1e-07
      %v1039 = vadd.f32 %v913, 1e-07
      %v1040 = vadd.f32 %v925, 1e-07
      %v1041 = vadd.f32 %v937, 1e-07
      %v1042 = vadd.f32 %v949, 1e-07
      %v1043 = vadd.f32 %v961, 1e-07
      %v1044 = vadd.f32 %v973, 1e-07
      %v1045 = vadd.f32 %v985, 1e-07
      %v1046 = vadd.f32 %v997, 1e-07
      %v1047 = vadd.f32 %v1009, 1e-07
      %v1048 = vadd.f32 %v1021, 1e-07
      %v1049 = vadd.f32 %v1033, 1e-07
      %v1050 = vsub.f32 %v1034, %v1042
      %v1051 = vsub.f32 %v1035, %v1043
      %v1052 = vsub.f32 %v1036, %v1044
      %v1053 = vsub.f32 %v1037, %v1045
      %v1054 = vsub.f32 %v1038, %v1046
      %v1055 = vsub.f32 %v1039, %v1047
      %v1056 = vsub.f32 %v1040, %v1048
      %v1057 = vsub.f32 %v1041, %v1049
      %v1058 = vadd.f32 %v1034, %v1042
      %v1059 = vadd.f32 %v1035, %v1043
      %v1060 = vadd.f32 %v1036, %v1044
      %v1061 = vadd.f32 %v1037, %v1045
      %v1062 = vadd.f32 %v1038, %v1046
      %v1063 = vadd.f32 %v1039, %v1047
      %v1064 = vadd.f32 %v1040, %v1048
      %v1065 = vadd.f32 %v1041, %v1049
      %v1066 = vlog2.pop %v1034
      %v1067 = vmul.f32 %v1066, 0.6931472
      %v1068 = vlog2.pop %v1035
      %v1069 = vmul.f32 %v1068, 0.6931472
      %v1070 = vlog2.pop %v1036
      %v1071 = vmul.f32 %v1070, 0.6931472
      %v1072 = vlog2.pop %v1037
      %v1073 = vmul.f32 %v1072, 0.6931472
      %v1074 = vlog2.pop %v1038
      %v1075 = vmul.f32 %v1074, 0.6931472
      %v1076 = vlog2.pop %v1039
      %v1077 = vmul.f32 %v1076, 0.6931472
      %v1078 = vlog2.pop %v1040
      %v1079 = vmul.f32 %v1078, 0.6931472
      %v1080 = vlog2.pop %v1041
      %v1081 = vmul.f32 %v1080, 0.6931472
      %v1082 = vlog2.pop %v1042
      %v1083 = vmul.f32 %v1082, 0.6931472
      %v1084 = vlog2.pop %v1043
      %v1085 = vmul.f32 %v1084, 0.6931472
      %v1086 = vlog2.pop %v1044
      %v1087 = vmul.f32 %v1086, 0.6931472
      %v1088 = vlog2.pop %v1045
      %v1089 = vmul.f32 %v1088, 0.6931472
      %v1090 = vlog2.pop %v1046
      %v1091 = vmul.f32 %v1090, 0.6931472
      %v1092 = vlog2.pop %v1047
      %v1093 = vmul.f32 %v1092, 0.6931472
      %v1094 = vlog2.pop %v1048
      %v1095 = vmul.f32 %v1094, 0.6931472
      %v1096 = vlog2.pop %v1049
      %v1097 = vmul.f32 %v1096, 0.6931472
      %v1098 = vsub.f32 %v1067, %v1083
      %v1099 = vsub.f32 %v1069, %v1085
      %v1100 = vsub.f32 %v1071, %v1087
      %v1101 = vsub.f32 %v1073, %v1089
      %v1102 = vsub.f32 %v1075, %v1091
      %v1103 = vsub.f32 %v1077, %v1093
      %v1104 = vsub.f32 %v1079, %v1095
      %v1105 = vsub.f32 %v1081, %v1097
      %v1106 = vand.u32 2147483647, %v1098
      %v1107 = vand.u32 2147483647, %v1099
      %v1108 = vand.u32 2147483647, %v1100
      %v1109 = vand.u32 2147483647, %v1101
      %v1110 = vand.u32 2147483647, %v1102
      %v1111 = vand.u32 2147483647, %v1103
      %v1112 = vand.u32 2147483647, %v1104
      %v1113 = vand.u32 2147483647, %v1105
      %v1114 = vlaneseq
      %v1115 = vshrl.u32 %v1114, 7
      %v1116 = vadd.s32 %v1115, 8
      %v1117 = vadd.s32 %v1115, 16
      %v1118 = vadd.s32 %v1115, 24
      %vm1119 = vcmp.lt.s32.totalorder %v1115, 29
      %vm1120 = vcmp.lt.s32.totalorder %v1116, 29
      %vm1121 = vcmp.lt.s32.totalorder %v1117, 29
      %vm1122 = vcmp.lt.s32.totalorder %v1118, 29
      %v1123 = vsel %vm1119, 1, 0
      %v1124 = vsel %vm1120, 1, 0
      %v1125 = vsel %vm1121, 1, 0
      %v1126 = vsel %vm1122, 1, 0
      %v1127 = vcvt.s32.f32 %v1123
      %v1128 = vcvt.s32.f32 %v1124
      %v1129 = vcvt.s32.f32 %v1125
      %v1130 = vcvt.s32.f32 %v1126
      %v1131 = vmul.f32 %v1127, %v1050
      %v1132 = vmul.f32 %v1128, %v1051
      %v1133 = vmul.f32 %v1129, %v1052
      %v1134 = vmul.f32 %v1130, %v1053
      %v1135 = vmul.f32 %v1127, %v1054
      %v1136 = vmul.f32 %v1128, %v1055
      %v1137 = vmul.f32 %v1129, %v1056
      %v1138 = vmul.f32 %v1130, %v1057
      %v1139 = vmul.f32 %v1131, %v1050
      %v1140 = vmul.f32 %v1132, %v1051
      %v1141 = vmul.f32 %v1133, %v1052
      %v1142 = vmul.f32 %v1134, %v1053
      %v1143 = vmul.f32 %v1135, %v1054
      %v1144 = vmul.f32 %v1136, %v1055
      %v1145 = vmul.f32 %v1137, %v1056
      %v1146 = vmul.f32 %v1138, %v1057
      %v1147 = vadd.f32 %v1139, %v1140
      %v1148 = vadd.f32 %v1147, %v1141
      %v1149 = vadd.f32 %v1148, %v1142
      %v1150 = vrot.slane %v1149, 4
      %v1151 = vadd.f32 %v1149, %v1150
      %v1152 = vrot.slane %v1151, 2
      %v1153 = vadd.f32 %v1151, %v1152
      %v1154 = vrot.slane %v1153, 1
      %v1155 = vadd.f32 %v1153, %v1154
      %v1156 = vadd.f32 %v1143, %v1144
      %v1157 = vadd.f32 %v1156, %v1145
      %v1158 = vadd.f32 %v1157, %v1146
      %v1159 = vrot.slane %v1158, 4
      %v1160 = vadd.f32 %v1158, %v1159
      %v1161 = vrot.slane %v1160, 2
      %v1162 = vadd.f32 %v1160, %v1161
      %v1163 = vrot.slane %v1162, 1
      %v1164 = vadd.f32 %v1162, %v1163
      %v1165 = vadd.f32 %v1155, 0.0
      %v1166 = vadd.f32 %v1164, 0.0
      %v1167 = vmul.f32 %v1127, %v1058
      %v1168 = vmul.f32 %v1128, %v1059
      %v1169 = vmul.f32 %v1129, %v1060
      %v1170 = vmul.f32 %v1130, %v1061
      %v1171 = vmul.f32 %v1127, %v1062
      %v1172 = vmul.f32 %v1128, %v1063
      %v1173 = vmul.f32 %v1129, %v1064
      %v1174 = vmul.f32 %v1130, %v1065
      %v1175 = vmul.f32 %v1167, %v1058
      %v1176 = vmul.f32 %v1168, %v1059
      %v1177 = vmul.f32 %v1169, %v1060
      %v1178 = vmul.f32 %v1170, %v1061
      %v1179 = vmul.f32 %v1171, %v1062
      %v1180 = vmul.f32 %v1172, %v1063
      %v1181 = vmul.f32 %v1173, %v1064
      %v1182 = vmul.f32 %v1174, %v1065
      %v1183 = vadd.f32 %v1175, %v1176
      %v1184 = vadd.f32 %v1183, %v1177
      %v1185 = vadd.f32 %v1184, %v1178
      %v1186 = vrot.slane %v1185, 4
      %v1187 = vadd.f32 %v1185, %v1186
      %v1188 = vrot.slane %v1187, 2
      %v1189 = vadd.f32 %v1187, %v1188
      %v1190 = vrot.slane %v1189, 1
      %v1191 = vadd.f32 %v1189, %v1190
      %v1192 = vadd.f32 %v1179, %v1180
      %v1193 = vadd.f32 %v1192, %v1181
      %v1194 = vadd.f32 %v1193, %v1182
      %v1195 = vrot.slane %v1194, 4
      %v1196 = vadd.f32 %v1194, %v1195
      %v1197 = vrot.slane %v1196, 2
      %v1198 = vadd.f32 %v1196, %v1197
      %v1199 = vrot.slane %v1198, 1
      %v1200 = vadd.f32 %v1198, %v1199
      %v1201 = vadd.f32 %v1191, 0.0
      %v1202 = vadd.f32 %v1200, 0.0
      %v1203 = vmul.f32 %v1127, %v1106
      %v1204 = vmul.f32 %v1128, %v1107
      %v1205 = vmul.f32 %v1129, %v1108
      %v1206 = vmul.f32 %v1130, %v1109
      %v1207 = vmul.f32 %v1127, %v1110
      %v1208 = vmul.f32 %v1128, %v1111
      %v1209 = vmul.f32 %v1129, %v1112
      %v1210 = vmul.f32 %v1130, %v1113
      %v1211 = vadd.f32 %v1203, %v1204
      %v1212 = vadd.f32 %v1211, %v1205
      %v1213 = vadd.f32 %v1212, %v1206
      %v1214 = vrot.slane %v1213, 4
      %v1215 = vadd.f32 %v1213, %v1214
      %v1216 = vrot.slane %v1215, 2
      %v1217 = vadd.f32 %v1215, %v1216
      %v1218 = vrot.slane %v1217, 1
      %v1219 = vadd.f32 %v1217, %v1218
      %v1220 = vadd.f32 %v1207, %v1208
      %v1221 = vadd.f32 %v1220, %v1209
      %v1222 = vadd.f32 %v1221, %v1210
      %v1223 = vrot.slane %v1222, 4
      %v1224 = vadd.f32 %v1222, %v1223
      %v1225 = vrot.slane %v1224, 2
      %v1226 = vadd.f32 %v1224, %v1225
      %v1227 = vrot.slane %v1226, 1
      %v1228 = vadd.f32 %v1226, %v1227
      %v1229 = vadd.f32 %v1219, 0.0
      %v1230 = vadd.f32 %v1228, 0.0
      %1231 = vst [vmem:[%s200] sm:$0x1] %v1165
      %1232 = vst [vmem:[%s200 + $0x4] sm:$0x1] %v1166
      %1233 = vst [vmem:[%s200 + $0x1] sm:$0x1] %v1201
      %1234 = vst [vmem:[%s200 + $0x5] sm:$0x1] %v1202
      %1235 = vst [vmem:[%s200 + $0x2] sm:$0x1] %v1229
      %1236 = vst [vmem:[%s200 + $0x6] sm:$0x1] %v1230
      %s1237 = smul.u32 2, %s14
      %p1238 = scmp.lt.s32.totalorder %s1237, 3
      %s1239 = scalar_select %p1238, %s1237, 3
      %s1240 = smul.addr %s1239, 4
      %s1241 = scalar_lea.vmem %s3, %s1240
      // Predicated region
      $region33: #{mss_loss.3} parent=31 // pred_check
        %p1242 = pneg %p105
      $region34: #{mss_loss.3} parent=31 // pred_check_branch
        %1244 = sbr.rel (%p1242) target = $region36
      $region35: #{mss_loss.3} parent=31 // pred_region
        %s1245 = smul.u32 2, %s14
      $region36: #{mss_loss.3} parent=31 // pred_fallthru
        _
    $region32: #{mss_loss.3} parent=5 // pred_fallthru
      _
    %p1246 = scmp.le.s32.totalorder 2, %s9
    // Predicated region
    $region37: #{mss_loss.3} parent=5 // pred_check
      %p1247 = pneg %p1246
    $region38: #{mss_loss.3} parent=5 // pred_check_branch
      %1249 = sbr.rel (%p1247) target = $region40
    $region39: #{mss_loss.3} parent=5 // pred_region
      %s1250 = ssub.s32 %s9, 2
      // Predicated region
      $region41: #{mss_loss.3} parent=39 // pred_check
        %p1251 = pneg %p111
      $region42: #{mss_loss.3} parent=39 // pred_check_branch
        %1253 = sbr.rel (%p1251) target = $region44
      $region43: #{mss_loss.3} parent=39 // pred_region
        %s1254 = smul.u32 2, %s15
        %p1255 = scmp.lt.s32.totalorder %s1254, 3
        %s1256 = scalar_select %p1255, %s1254, 3
        %s1257 = smul.addr %s1256, 4
        %s1258 = scalar_lea.vmem %s3, %s1257
      $region44: #{mss_loss.3} parent=39 // pred_fallthru
        _
    $region40: #{mss_loss.3} parent=5 // pred_fallthru
      _
  $region6: #{mss_loss.3} parent=0 // loop_footer
    %s13 = sadd.s32 1, %s9
  $region7: #{mss_loss.3} parent=0 // loop_footer_branch
    %8 = sbr.rel target = $region3
  $region8: #{mss_loss.3} parent=0 // loop_exit
    _

// kernel: mss_loss.2
$region0: #{mss_loss.2}
  #allocation0 [shape = 'u32[]', space=smem, size = 0x4, offset = 0x4, fixed_abs, tag = 'smem constant byte address 0x4 - core index']
  #allocation1 [shape = 'u32[72,128]{1,0:T(1,128)}', space=vmem, size = 0x9000, scoped, tag = 'internal scratch']
  %s0 = inlined_call_operand.vmem [shape: bf16[4,19,64], index: 0, kind: input, shape index: {}]
  %s1 = inlined_call_operand.vmem [shape: bf16[4,19,64], index: 1, kind: input, shape index: {}]
  %s2 = inlined_call_operand.vmem [shape: bf16[256,512], index: 2, kind: input, shape index: {}]
  %s3 = inlined_call_operand.vmem [shape: f32[4,3,256], index: 3, kind: output, shape index: {}]
  %s4 = sld [smem:[#allocation0]]
  $region45: #{mss_loss.2} parent=0
    _
  %s6 = ssub.s32 1, %s4
  %s7 = scalar_select 0, %s6, %s4
  loop: start=0, step=1, limit=4
  $region2: #{mss_loss.2} parent=0 // loop_pre_header
    _
  $region3: #{mss_loss.2} parent=0 // loop_header
    %s9 = sphi 0, %s13
    %p10 = scmp.ge.s32.totalorder %s9, 4
    %s19 = sphi 0, %s21
    %s22 = sphi 0, %s19
    %s23 = sphi 0, %s22
    %s39 = sphi 0, %s23
    %s45 = sphi 0, %s47
    %s48 = sphi 0, %s45
    %s49 = sphi 0, %s48
    %s65 = sphi 0, %s49
    %s69 = sphi 0, %s69
    %s71 = sphi 0, %s69
    %s72 = sphi 0, %s71
    %s86 = sphi 0, %s72
    %s92 = sphi 0, %s94
    %s95 = sphi 0, %s92
    %s96 = sphi 0, %s95
    %s112 = sphi 0, %s96
  $region4: #{mss_loss.2} parent=0 // loop_header_branch
    %12 = sbr.rel (%p10) target = $region8
  $region5: #{mss_loss.2} parent=0 // loop_body
    %s14 = ssub.s32 %s9, 1
    %s15 = ssub.s32 %s9, 2
    %s16 = sadd.s32 %s9, 1
    %s17 = ssub.s32 %s9, %s16
    %p18 = scmp.eq.s32.totalorder %s17, 0
    %s20 = sadd.s32 %s19, 1
    %s21 = scalar_select %p18, %s19, %s20
    %p24 = pneg %p18
    %p25 = scmp.eq.s32.totalorder %s9, 1
    %p26 = por %p24, %p25
    %p27 = scmp.ne.s32.totalorder %s19, %s22
    %p28 = scmp.eq.s32.totalorder %s9, 0
    %p29 = por %p27, %p28
    %p30 = scmp.ne.s32.totalorder %s19, %s22
    %p31 = scmp.eq.s32.totalorder %s14, 1
    %p32 = por %p30, %p31
    %p33 = scmp.ne.s32.totalorder %s22, %s23
    %p34 = scmp.eq.s32.totalorder %s14, 0
    %p35 = por %p33, %p34
    %p36 = scmp.ne.s32.totalorder %s22, %s23
    %p37 = scmp.eq.s32.totalorder %s15, 1
    %p38 = por %p36, %p37
    %p40 = scmp.ne.s32.totalorder %s23, %s39
    %p41 = scmp.eq.s32.totalorder %s15, 0
    %p42 = por %p40, %p41
    %s43 = ssub.s32 %s9, %s16
    %p44 = scmp.eq.s32.totalorder %s43, 0
    %s46 = sadd.s32 %s45, 1
    %s47 = scalar_select %p44, %s45, %s46
    %p50 = pneg %p44
    %p51 = scmp.eq.s32.totalorder %s9, 1
    %p52 = por %p50, %p51
    %p53 = scmp.ne.s32.totalorder %s45, %s48
    %p54 = scmp.eq.s32.totalorder %s9, 0
    %p55 = por %p53, %p54
    %p56 = scmp.ne.s32.totalorder %s45, %s48
    %p57 = scmp.eq.s32.totalorder %s14, 1
    %p58 = por %p56, %p57
    %p59 = scmp.ne.s32.totalorder %s48, %s49
    %p60 = scmp.eq.s32.totalorder %s14, 0
    %p61 = por %p59, %p60
    %p62 = scmp.ne.s32.totalorder %s48, %s49
    %p63 = scmp.eq.s32.totalorder %s15, 1
    %p64 = por %p62, %p63
    %p66 = scmp.ne.s32.totalorder %s49, %s65
    %p67 = scmp.eq.s32.totalorder %s15, 0
    %p68 = por %p66, %p67
    %s70 = sadd.s32 %s69, 1
    %p73 = scmp.eq.s32.totalorder %s9, 1
    %p74 = scmp.ne.s32.totalorder %s69, %s71
    %p75 = scmp.eq.s32.totalorder %s9, 0
    %p76 = por %p74, %p75
    %p77 = scmp.ne.s32.totalorder %s69, %s71
    %p78 = scmp.eq.s32.totalorder %s14, 1
    %p79 = por %p77, %p78
    %p80 = scmp.ne.s32.totalorder %s71, %s72
    %p81 = scmp.eq.s32.totalorder %s14, 0
    %p82 = por %p80, %p81
    %p83 = scmp.ne.s32.totalorder %s71, %s72
    %p84 = scmp.eq.s32.totalorder %s15, 1
    %p85 = por %p83, %p84
    %p87 = scmp.ne.s32.totalorder %s72, %s86
    %p88 = scmp.eq.s32.totalorder %s15, 0
    %p89 = por %p87, %p88
    %s90 = ssub.s32 %s9, %s16
    %p91 = scmp.eq.s32.totalorder %s90, 0
    %s93 = sadd.s32 %s92, 1
    %s94 = scalar_select %p91, %s92, %s93
    %p97 = pneg %p91
    %p98 = scmp.eq.s32.totalorder %s9, 1
    %p99 = por %p97, %p98
    %p100 = scmp.ne.s32.totalorder %s92, %s95
    %p101 = scmp.eq.s32.totalorder %s9, 0
    %p102 = por %p100, %p101
    %p103 = scmp.ne.s32.totalorder %s92, %s95
    %p104 = scmp.eq.s32.totalorder %s14, 1
    %p105 = por %p103, %p104
    %p106 = scmp.ne.s32.totalorder %s95, %s96
    %p107 = scmp.eq.s32.totalorder %s14, 0
    %p108 = por %p106, %p107
    %p109 = scmp.ne.s32.totalorder %s95, %s96
    %p110 = scmp.eq.s32.totalorder %s15, 1
    %p111 = por %p109, %p110
    %p113 = scmp.ne.s32.totalorder %s96, %s112
    %p114 = scmp.eq.s32.totalorder %s15, 0
    %p115 = por %p113, %p114
    %p116 = scmp.le.s32.totalorder 1, %s9
    %p117 = scmp.lt.s32.totalorder %s9, 3
    %p118 = pnand %p116, %p117
    %p119 = pneg %p118
    // Predicated region
    $region9: #{mss_loss.2} parent=5 // pred_check
      _
    $region10: #{mss_loss.2} parent=5 // pred_check_branch
      %121 = sbr.rel (%p118) target = $region12
    $region11: #{mss_loss.2} parent=5 // pred_region
      %s122 = ssub.s32 %s9, 1
      // Predicated region
      $region13: #{mss_loss.2} parent=11 // pred_check
        %p123 = pneg %p82
      $region14: #{mss_loss.2} parent=11 // pred_check_branch
        %125 = sbr.rel (%p123) target = $region16
      $region15: #{mss_loss.2} parent=11 // pred_region
        _
      $region16: #{mss_loss.2} parent=11 // pred_fallthru
        _
    $region12: #{mss_loss.2} parent=5 // pred_fallthru
      _
    %p126 = scmp.lt.s32.totalorder %s9, 2
    // Predicated region
    $region17: #{mss_loss.2} parent=5 // pred_check
      %p127 = pneg %p126
    $region18: #{mss_loss.2} parent=5 // pred_check_branch
      %129 = sbr.rel (%p127) target = $region20
    $region19: #{mss_loss.2} parent=5 // pred_region
      // Predicated region
      $region21: #{mss_loss.2} parent=19 // pred_check
        %p130 = pneg %p29
      $region22: #{mss_loss.2} parent=19 // pred_check_branch
        %132 = sbr.rel (%p130) target = $region24
      $region23: #{mss_loss.2} parent=19 // pred_region
        %s133 = smul.u32 2, %s9
        %p134 = scmp.lt.s32.totalorder %s133, 3
        %s135 = scalar_select %p134, %s133, 3
        %s136 = smul.addr %s135, 3
        %s137 = smul.addr %s136, 4
        %s138 = scalar_lea.vmem %s0, %s137
        %s139 = smul.u32 2, %s9
      $region24: #{mss_loss.2} parent=19 // pred_fallthru
        _
      // Predicated region
      $region25: #{mss_loss.2} parent=19 // pred_check
        %p140 = pneg %p55
      $region26: #{mss_loss.2} parent=19 // pred_check_branch
        %142 = sbr.rel (%p140) target = $region28
      $region27: #{mss_loss.2} parent=19 // pred_region
        %s143 = smul.u32 2, %s9
        %p144 = scmp.lt.s32.totalorder %s143, 3
        %s145 = scalar_select %p144, %s143, 3
        %s146 = smul.addr %s145, 3
        %s147 = smul.addr %s146, 4
        %s148 = scalar_lea.vmem %s1, %s147
        %s149 = smul.u32 2, %s9
      $region28: #{mss_loss.2} parent=19 // pred_fallthru
        _
    $region20: #{mss_loss.2} parent=5 // pred_fallthru
      _
    %p150 = scmp.le.s32.totalorder 1, %s9
    %p151 = scmp.lt.s32.totalorder %s9, 3
    %p152 = pnand %p150, %p151
    %p153 = pneg %p152
    // Predicated region
    $region29: #{mss_loss.2} parent=5 // pred_check
      _
    $region30: #{mss_loss.2} parent=5 // pred_check_branch
      %155 = sbr.rel (%p152) target = $region32
    $region31: #{mss_loss.2} parent=5 // pred_region
      %s156 = ssub.s32 %s9, 1
      %s157 = smul.u32 2, %s14
      %p158 = scmp.lt.s32.totalorder %s157, 3
      %s159 = scalar_select %p158, %s157, 3
      %s160 = smul.addr %s159, 3
      %s161 = smul.addr %s160, 4
      %s162 = scalar_lea.vmem %s0, %s161
      %p163 = pneg %p35
      %p164 = pneg %p32
      %s165 = smul.u32 2, %s14
      %p166 = scmp.lt.s32.totalorder %s165, 3
      %s167 = scalar_select %p166, %s165, 3
      %s168 = smul.addr %s167, 3
      %s169 = smul.addr %s168, 4
      %s170 = scalar_lea.vmem %s1, %s169
      %p171 = pneg %p61
      %p172 = pneg %p58
      %p173 = pneg %p82
      %p174 = pneg %p79
      %p175 = pneg %p108
      %p176 = pneg %p105
      %s177 = smul.u32 2, %s14
      %p178 = scmp.lt.s32.totalorder %s177, 3
      %s179 = scalar_select %p178, %s177, 3
      %s180 = smul.addr %s179, 2
      %s181 = smul.addr %s180, 4
      %s182 = scalar_lea.vmem %s3, %s181
      %s183 = smul.u32 2, %s14
      %p184 = scmp.lt.s32.totalorder %s183, 3
      %s185 = scalar_select %p184, %s183, 3
      %s186 = smul.addr %s185, 3
      %s187 = smul.addr %s186, 4
      %s188 = scalar_lea.vmem %s0, %s187
      %s189 = smul.u32 2, %s14
      %s190 = smul.u32 2, %s14
      %p191 = scmp.lt.s32.totalorder %s190, 3
      %s192 = scalar_select %p191, %s190, 3
      %s193 = smul.addr %s192, 3
      %s194 = smul.addr %s193, 4
      %s195 = scalar_lea.vmem %s1, %s194
      %s196 = smul.u32 2, %s14
      %s197 = smul.u32 2, %s14
      %p198 = scmp.lt.s32.totalorder %s197, 3
      %s199 = scalar_select %p198, %s197, 3
      %s200 = smul.addr %s199, 2
      %s201 = smul.addr %s200, 4
      %s202 = scalar_lea.vmem %s3, %s201
      %s203 = smul.u32 2, %s14
      %v204 = vld [vmem:[%s2] sm:$0xff]
      %v205 = vld [vmem:[%s2 + $0x8] sm:$0xff]
      %v206 = vld [vmem:[%s2 + $0x10] sm:$0xff]
      %v207 = vld [vmem:[%s2 + $0x18] sm:$0xff]
      %v208 = vld [vmem:[%s2 + $0x20] sm:$0xff]
      %v209 = vld [vmem:[%s2 + $0x28] sm:$0xff]
      %v210 = vld [vmem:[%s2 + $0x30] sm:$0xff]
      %v211 = vld [vmem:[%s2 + $0x38] sm:$0xff]
      %v212 = vld [vmem:[%s2 + $0x40] sm:$0xff]
      %v213 = vld [vmem:[%s2 + $0x48] sm:$0xff]
      %v214 = vld [vmem:[%s2 + $0x50] sm:$0xff]
      %v215 = vld [vmem:[%s2 + $0x58] sm:$0xff]
      %v216 = vld [vmem:[%s2 + $0x60] sm:$0xff]
      %v217 = vld [vmem:[%s2 + $0x68] sm:$0xff]
      %v218 = vld [vmem:[%s2 + $0x70] sm:$0xff]
      %v219 = vld [vmem:[%s2 + $0x78] sm:$0xff]
      %v220 = vld [vmem:[%s2 + $0x80] sm:$0xff]
      %v221 = vld [vmem:[%s2 + $0x88] sm:$0xff]
      %v222 = vld [vmem:[%s2 + $0x90] sm:$0xff]
      %v223 = vld [vmem:[%s2 + $0x98] sm:$0xff]
      %v224 = vld [vmem:[%s2 + $0xa0] sm:$0xff]
      %v225 = vld [vmem:[%s2 + $0xa8] sm:$0xff]
      %v226 = vld [vmem:[%s2 + $0xb0] sm:$0xff]
      %v227 = vld [vmem:[%s2 + $0xb8] sm:$0xff]
      %v228 = vld [vmem:[%s2 + $0xc0] sm:$0xff]
      %v229 = vld [vmem:[%s2 + $0xc8] sm:$0xff]
      %v230 = vld [vmem:[%s2 + $0xd0] sm:$0xff]
      %v231 = vld [vmem:[%s2 + $0xd8] sm:$0xff]
      %v232 = vld [vmem:[%s2 + $0xe0] sm:$0xff]
      %v233 = vld [vmem:[%s2 + $0xe8] sm:$0xff]
      %v234 = vld [vmem:[%s2 + $0xf0] sm:$0xff]
      %v235 = vld [vmem:[%s2 + $0xf8] sm:$0xff]
      %v236 = vld [vmem:[%s2 + $0x100] sm:$0xff]
      %v237 = vld [vmem:[%s2 + $0x108] sm:$0xff]
      %v238 = vld [vmem:[%s2 + $0x110] sm:$0xff]
      %v239 = vld [vmem:[%s2 + $0x118] sm:$0xff]
      %v240 = vld [vmem:[%s2 + $0x120] sm:$0xff]
      %v241 = vld [vmem:[%s2 + $0x128] sm:$0xff]
      %v242 = vld [vmem:[%s2 + $0x130] sm:$0xff]
      %v243 = vld [vmem:[%s2 + $0x138] sm:$0xff]
      %v244 = vld [vmem:[%s2 + $0x140] sm:$0xff]
      %v245 = vld [vmem:[%s2 + $0x148] sm:$0xff]
      %v246 = vld [vmem:[%s2 + $0x150] sm:$0xff]
      %v247 = vld [vmem:[%s2 + $0x158] sm:$0xff]
      %v248 = vld [vmem:[%s2 + $0x160] sm:$0xff]
      %v249 = vld [vmem:[%s2 + $0x168] sm:$0xff]
      %v250 = vld [vmem:[%s2 + $0x170] sm:$0xff]
      %v251 = vld [vmem:[%s2 + $0x178] sm:$0xff]
      %v252 = vld [vmem:[%s2 + $0x180] sm:$0xff]
      %v253 = vld [vmem:[%s2 + $0x188] sm:$0xff]
      %v254 = vld [vmem:[%s2 + $0x190] sm:$0xff]
      %v255 = vld [vmem:[%s2 + $0x198] sm:$0xff]
      %v256 = vld [vmem:[%s2 + $0x1a0] sm:$0xff]
      %v257 = vld [vmem:[%s2 + $0x1a8] sm:$0xff]
      %v258 = vld [vmem:[%s2 + $0x1b0] sm:$0xff]
      %v259 = vld [vmem:[%s2 + $0x1b8] sm:$0xff]
      %v260 = vld [vmem:[%s2 + $0x1c0] sm:$0xff]
      %v261 = vld [vmem:[%s2 + $0x1c8] sm:$0xff]
      %v262 = vld [vmem:[%s2 + $0x1d0] sm:$0xff]
      %v263 = vld [vmem:[%s2 + $0x1d8] sm:$0xff]
      %v264 = vld [vmem:[%s2 + $0x1e0] sm:$0xff]
      %v265 = vld [vmem:[%s2 + $0x1e8] sm:$0xff]
      %v266 = vld [vmem:[%s2 + $0x1f0] sm:$0xff]
      %v267 = vld [vmem:[%s2 + $0x1f8] sm:$0xff]
      %v268 = vld [vmem:[%s188] sm:$0xf]
      %v269 = vld [vmem:[%s188 + $0x4] sm:$0xf]
      %v270 = vld [vmem:[%s188 + $0xc] sm:$0xf]
      %v271 = vld [vmem:[%s188 + $0x10] sm:$0xf]
      %v272 = vld [vmem:[%s188 + $0x8] sm:$0x1]
      %v273 = vld [vmem:[%s188 + $0x14] sm:$0x1]
      %v274 = vld [vmem:[%s188] sm:$0xe]
      %v275 = vld [vmem:[%s188 + $0xc] sm:$0xe]
      %v276 = vld [vmem:[%s188 + $0x8] sm:$0x3]
      %v277 = vld [vmem:[%s188 + $0x14] sm:$0x3]
      %v282 = vunpack.c.l.b16 %v268
      %v283 = vunpack.c.l.b16 %v269
      %v284 = vunpack.c.l.b16 %v270
      %v285 = vunpack.c.l.b16 %v271
      %v286 = vpack.c.b16 %v283, %v282
      %v287 = vpack.c.b16 %v285, %v284
      %v290 = vunpack.c.l.b16 %v272
      %v291 = vunpack.c.l.b16 %v273
      %v292 = vpack.c.b16 %v290, %v290
      %v293 = vpack.c.b16 %v291, %v291
      %vm294 = vsmask.f32 7424
      %v296 = vshrl.u32 %v286, 16
      %v298 = vshll.u32 %v286, 16
      %v300 = vrot.slane %v298, 1
      %v301 = vor.u32 %v296, %v300
      %v303 = vshll.u32 %v292, 16
      %v305 = vrot.slane %v303, 1
      %v306 = vsel %vm294, %v301, %v305
      %v308 = vshrl.u32 %v287, 16
      %v310 = vshll.u32 %v287, 16
      %v312 = vrot.slane %v310, 1
      %v313 = vor.u32 %v308, %v312
      %v315 = vshll.u32 %v293, 16
      %v317 = vrot.slane %v315, 1
      %v318 = vsel %vm294, %v313, %v317
      %319 = vrot.lane.b32.xlu0 %v306, 64
      %v320 = vpop.permute.xlu0 %319
      %321 = vrot.lane.b32.xlu0 %v318, 64
      %v322 = vpop.permute.xlu0 %321
      %v325 = vunpack.c.l.b16 %v274
      %v326 = vunpack.c.l.b16 %v275
      %v327 = vpack.c.b16 %v283, %v325
      %v328 = vpack.c.b16 %v285, %v326
      %vm329 = vcmask 1046528
      %v330 = vrot.slane %v327, 1
      %v331 = vrot.slane %v292, 1
      %v332 = vsel %vm329, %v330, %v331
      %v333 = vrot.slane %v328, 1
      %v334 = vrot.slane %v293, 1
      %v335 = vsel %vm329, %v333, %v334
      %v338 = vunpack.c.l.b16 %v276
      %v339 = vunpack.c.l.b16 %v277
      %v340 = vpack.c.b16 %v338, %v338
      %v341 = vpack.c.b16 %v339, %v339
      %vm342 = vsmask.f32 6400
      %v344 = vshrl.u32 %v327, 16
      %v346 = vrot.slane %v344, 1
      %v347 = vshll.u32 %v327, 16
      %v349 = vrot.slane %v347, 2
      %v350 = vor.u32 %v346, %v349
      %v352 = vshrl.u32 %v340, 16
      %v354 = vrot.slane %v352, 1
      %v355 = vshll.u32 %v340, 16
      %v357 = vrot.slane %v355, 2
      %v358 = vor.u32 %v354, %v357
      %v359 = vsel %vm342, %v350, %v358
      %v361 = vshrl.u32 %v328, 16
      %v363 = vrot.slane %v361, 1
      %v364 = vshll.u32 %v328, 16
      %v366 = vrot.slane %v364, 2
      %v367 = vor.u32 %v363, %v366
      %v369 = vshrl.u32 %v341, 16
      %v371 = vrot.slane %v369, 1
      %v372 = vshll.u32 %v341, 16
      %v374 = vrot.slane %v372, 2
      %v375 = vor.u32 %v371, %v374
      %v376 = vsel %vm342, %v367, %v375
      %377 = vrot.lane.b32.xlu0 %v359, 64
      %v378 = vpop.permute.xlu0 %377
      %379 = vrot.lane.b32.xlu0 %v376, 64
      %v380 = vpop.permute.xlu0 %379
      %vm381 = vcmask 523264
      %v383 = vsel %vm381, %v286, %v320
      %v386 = vsel %vm381, %v287, %v322
      %v390 = vsel %vm381, %v332, %v378
      %v394 = vsel %vm381, %v335, %v380
      %v396 = vld [vmem:[%s195] sm:$0xf]
      %v397 = vld [vmem:[%s195 + $0x4] sm:$0xf]
      %v398 = vld [vmem:[%s195 + $0xc] sm:$0xf]
      %v399 = vld [vmem:[%s195 + $0x10] sm:$0xf]
      %v400 = vld [vmem:[%s195 + $0x8] sm:$0x1]
      %v401 = vld [vmem:[%s195 + $0x14] sm:$0x1]
      %v402 = vld [vmem:[%s195] sm:$0xe]
      %v403 = vld [vmem:[%s195 + $0xc] sm:$0xe]
      %v404 = vld [vmem:[%s195 + $0x8] sm:$0x3]
      %v405 = vld [vmem:[%s195 + $0x14] sm:$0x3]
      %v410 = vunpack.c.l.b16 %v396
      %v411 = vunpack.c.l.b16 %v397
      %v412 = vunpack.c.l.b16 %v398
      %v413 = vunpack.c.l.b16 %v399
      %v414 = vpack.c.b16 %v411, %v410
      %v415 = vpack.c.b16 %v413, %v412
      %v418 = vunpack.c.l.b16 %v400
      %v419 = vunpack.c.l.b16 %v401
      %v420 = vpack.c.b16 %v418, %v418
      %v421 = vpack.c.b16 %v419, %v419
      %v423 = vshrl.u32 %v414, 16
      %v425 = vshll.u32 %v414, 16
      %v427 = vrot.slane %v425, 1
      %v428 = vor.u32 %v423, %v427
      %v430 = vshll.u32 %v420, 16
      %v432 = vrot.slane %v430, 1
      %v433 = vsel %vm294, %v428, %v432
      %v435 = vshrl.u32 %v415, 16
      %v437 = vshll.u32 %v415, 16
      %v439 = vrot.slane %v437, 1
      %v440 = vor.u32 %v435, %v439
      %v442 = vshll.u32 %v421, 16
      %v444 = vrot.slane %v442, 1
      %v445 = vsel %vm294, %v440, %v444
      %446 = vrot.lane.b32.xlu0 %v433, 64
      %v447 = vpop.permute.xlu0 %446
      %448 = vrot.lane.b32.xlu0 %v445, 64
      %v449 = vpop.permute.xlu0 %448
      %v452 = vunpack.c.l.b16 %v402
      %v453 = vunpack.c.l.b16 %v403
      %v454 = vpack.c.b16 %v411, %v452
      %v455 = vpack.c.b16 %v413, %v453
      %v456 = vrot.slane %v454, 1
      %v457 = vrot.slane %v420, 1
      %v458 = vsel %vm329, %v456, %v457
      %v459 = vrot.slane %v455, 1
      %v460 = vrot.slane %v421, 1
      %v461 = vsel %vm329, %v459, %v460
      %v464 = vunpack.c.l.b16 %v404
      %v465 = vunpack.c.l.b16 %v405
      %v466 = vpack.c.b16 %v464, %v464
      %v467 = vpack.c.b16 %v465, %v465
      %v469 = vshrl.u32 %v454, 16
      %v471 = vrot.slane %v469, 1
      %v472 = vshll.u32 %v454, 16
      %v474 = vrot.slane %v472, 2
      %v475 = vor.u32 %v471, %v474
      %v477 = vshrl.u32 %v466, 16
      %v479 = vrot.slane %v477, 1
      %v480 = vshll.u32 %v466, 16
      %v482 = vrot.slane %v480, 2
      %v483 = vor.u32 %v479, %v482
      %v484 = vsel %vm342, %v475, %v483
      %v486 = vshrl.u32 %v455, 16
      %v488 = vrot.slane %v486, 1
      %v489 = vshll.u32 %v455, 16
      %v491 = vrot.slane %v489, 2
      %v492 = vor.u32 %v488, %v491
      %v494 = vshrl.u32 %v467, 16
      %v496 = vrot.slane %v494, 1
      %v497 = vshll.u32 %v467, 16
      %v499 = vrot.slane %v497, 2
      %v500 = vor.u32 %v496, %v499
      %v501 = vsel %vm342, %v492, %v500
      %502 = vrot.lane.b32.xlu0 %v484, 64
      %v503 = vpop.permute.xlu0 %502
      %504 = vrot.lane.b32.xlu0 %v501, 64
      %v505 = vpop.permute.xlu0 %504
      %v507 = vsel %vm381, %v414, %v447
      %v510 = vsel %vm381, %v415, %v449
      %v514 = vsel %vm381, %v458, %v503
      %v518 = vsel %vm381, %v461, %v505
      %v584 = vunpack.c.l.b16 %v204
      %v585 = vunpack.c.h.b16 %v204
      %v586 = vunpack.c.l.b16 %v205
      %v587 = vunpack.c.h.b16 %v205
      %v588 = vunpack.c.l.b16 %v206
      %v589 = vunpack.c.h.b16 %v206
      %v590 = vunpack.c.l.b16 %v207
      %v591 = vunpack.c.h.b16 %v207
      %v592 = vunpack.c.l.b16 %v208
      %v593 = vunpack.c.h.b16 %v208
      %v594 = vunpack.c.l.b16 %v209
      %v595 = vunpack.c.h.b16 %v209
      %v596 = vunpack.c.l.b16 %v210
      %v597 = vunpack.c.h.b16 %v210
      %v598 = vunpack.c.l.b16 %v211
      %v599 = vunpack.c.h.b16 %v211
      %v600 = vunpack.c.l.b16 %v212
      %v601 = vunpack.c.h.b16 %v212
      %v602 = vunpack.c.l.b16 %v213
      %v603 = vunpack.c.h.b16 %v213
      %v604 = vunpack.c.l.b16 %v214
      %v605 = vunpack.c.h.b16 %v214
      %v606 = vunpack.c.l.b16 %v215
      %v607 = vunpack.c.h.b16 %v215
      %v608 = vunpack.c.l.b16 %v216
      %v609 = vunpack.c.h.b16 %v216
      %v610 = vunpack.c.l.b16 %v217
      %v611 = vunpack.c.h.b16 %v217
      %v612 = vunpack.c.l.b16 %v218
      %v613 = vunpack.c.h.b16 %v218
      %v614 = vunpack.c.l.b16 %v219
      %v615 = vunpack.c.h.b16 %v219
      %v616 = vunpack.c.l.b16 %v220
      %v617 = vunpack.c.h.b16 %v220
      %v618 = vunpack.c.l.b16 %v221
      %v619 = vunpack.c.h.b16 %v221
      %v620 = vunpack.c.l.b16 %v222
      %v621 = vunpack.c.h.b16 %v222
      %v622 = vunpack.c.l.b16 %v223
      %v623 = vunpack.c.h.b16 %v223
      %v624 = vunpack.c.l.b16 %v224
      %v625 = vunpack.c.h.b16 %v224
      %v626 = vunpack.c.l.b16 %v225
      %v627 = vunpack.c.h.b16 %v225
      %v628 = vunpack.c.l.b16 %v226
      %v629 = vunpack.c.h.b16 %v226
      %v630 = vunpack.c.l.b16 %v227
      %v631 = vunpack.c.h.b16 %v227
      %v632 = vunpack.c.l.b16 %v228
      %v633 = vunpack.c.h.b16 %v228
      %v634 = vunpack.c.l.b16 %v229
      %v635 = vunpack.c.h.b16 %v229
      %v636 = vunpack.c.l.b16 %v230
      %v637 = vunpack.c.h.b16 %v230
      %v638 = vunpack.c.l.b16 %v231
      %v639 = vunpack.c.h.b16 %v231
      %v640 = vunpack.c.l.b16 %v232
      %v641 = vunpack.c.h.b16 %v232
      %v642 = vunpack.c.l.b16 %v233
      %v643 = vunpack.c.h.b16 %v233
      %v644 = vunpack.c.l.b16 %v234
      %v645 = vunpack.c.h.b16 %v234
      %v646 = vunpack.c.l.b16 %v235
      %v647 = vunpack.c.h.b16 %v235
      %v648 = vunpack.c.l.b16 %v236
      %v649 = vunpack.c.h.b16 %v236
      %v650 = vunpack.c.l.b16 %v237
      %v651 = vunpack.c.h.b16 %v237
      %v652 = vunpack.c.l.b16 %v238
      %v653 = vunpack.c.h.b16 %v238
      %v654 = vunpack.c.l.b16 %v239
      %v655 = vunpack.c.h.b16 %v239
      %v656 = vunpack.c.l.b16 %v240
      %v657 = vunpack.c.h.b16 %v240
      %v658 = vunpack.c.l.b16 %v241
      %v659 = vunpack.c.h.b16 %v241
      %v660 = vunpack.c.l.b16 %v242
      %v661 = vunpack.c.h.b16 %v242
      %v662 = vunpack.c.l.b16 %v243
      %v663 = vunpack.c.h.b16 %v243
      %v664 = vunpack.c.l.b16 %v244
      %v665 = vunpack.c.h.b16 %v244
      %v666 = vunpack.c.l.b16 %v245
      %v667 = vunpack.c.h.b16 %v245
      %v668 = vunpack.c.l.b16 %v246
      %v669 = vunpack.c.h.b16 %v246
      %v670 = vunpack.c.l.b16 %v247
      %v671 = vunpack.c.h.b16 %v247
      %v672 = vunpack.c.l.b16 %v248
      %v673 = vunpack.c.h.b16 %v248
      %v674 = vunpack.c.l.b16 %v249
      %v675 = vunpack.c.h.b16 %v249
      %v676 = vunpack.c.l.b16 %v250
      %v677 = vunpack.c.h.b16 %v250
      %v678 = vunpack.c.l.b16 %v251
      %v679 = vunpack.c.h.b16 %v251
      %v680 = vunpack.c.l.b16 %v252
      %v681 = vunpack.c.h.b16 %v252
      %v682 = vunpack.c.l.b16 %v253
      %v683 = vunpack.c.h.b16 %v253
      %v684 = vunpack.c.l.b16 %v254
      %v685 = vunpack.c.h.b16 %v254
      %v686 = vunpack.c.l.b16 %v255
      %v687 = vunpack.c.h.b16 %v255
      %v688 = vunpack.c.l.b16 %v256
      %v689 = vunpack.c.h.b16 %v256
      %v690 = vunpack.c.l.b16 %v257
      %v691 = vunpack.c.h.b16 %v257
      %v692 = vunpack.c.l.b16 %v258
      %v693 = vunpack.c.h.b16 %v258
      %v694 = vunpack.c.l.b16 %v259
      %v695 = vunpack.c.h.b16 %v259
      %v696 = vunpack.c.l.b16 %v260
      %v697 = vunpack.c.h.b16 %v260
      %v698 = vunpack.c.l.b16 %v261
      %v699 = vunpack.c.h.b16 %v261
      %v700 = vunpack.c.l.b16 %v262
      %v701 = vunpack.c.h.b16 %v262
      %v702 = vunpack.c.l.b16 %v263
      %v703 = vunpack.c.h.b16 %v263
      %v704 = vunpack.c.l.b16 %v264
      %v705 = vunpack.c.h.b16 %v264
      %v706 = vunpack.c.l.b16 %v265
      %v707 = vunpack.c.h.b16 %v265
      %v708 = vunpack.c.l.b16 %v266
      %v709 = vunpack.c.h.b16 %v266
      %v710 = vunpack.c.l.b16 %v267
      %v711 = vunpack.c.h.b16 %v267
      %v712 = vpack.c.b16 %v588, %v584
      %v713 = vpack.c.b16 %v589, %v585
      %v714 = vpack.c.b16 %v590, %v586
      %v715 = vpack.c.b16 %v591, %v587
      %v716 = vpack.c.b16 %v596, %v592
      %v717 = vpack.c.b16 %v597, %v593
      %v718 = vpack.c.b16 %v598, %v594
      %v719 = vpack.c.b16 %v599, %v595
      %v720 = vpack.c.b16 %v604, %v600
      %v721 = vpack.c.b16 %v605, %v601
      %v722 = vpack.c.b16 %v606, %v602
      %v723 = vpack.c.b16 %v607, %v603
      %v724 = vpack.c.b16 %v612, %v608
      %v725 = vpack.c.b16 %v613, %v609
      %v726 = vpack.c.b16 %v614, %v610
      %v727 = vpack.c.b16 %v615, %v611
      %v728 = vpack.c.b16 %v620, %v616
      %v729 = vpack.c.b16 %v621, %v617
      %v730 = vpack.c.b16 %v622, %v618
      %v731 = vpack.c.b16 %v623, %v619
      %v732 = vpack.c.b16 %v628, %v624
      %v733 = vpack.c.b16 %v629, %v625
      %v734 = vpack.c.b16 %v630, %v626
      %v735 = vpack.c.b16 %v631, %v627
      %v736 = vpack.c.b16 %v636, %v632
      %v737 = vpack.c.b16 %v637, %v633
      %v738 = vpack.c.b16 %v638, %v634
      %v739 = vpack.c.b16 %v639, %v635
      %v740 = vpack.c.b16 %v644, %v640
      %v741 = vpack.c.b16 %v645, %v641
      %v742 = vpack.c.b16 %v646, %v642
      %v743 = vpack.c.b16 %v647, %v643
      %v744 = vpack.c.b16 %v652, %v648
      %v745 = vpack.c.b16 %v653, %v649
      %v746 = vpack.c.b16 %v654, %v650
      %v747 = vpack.c.b16 %v655, %v651
      %v748 = vpack.c.b16 %v660, %v656
      %v749 = vpack.c.b16 %v661, %v657
      %v750 = vpack.c.b16 %v662, %v658
      %v751 = vpack.c.b16 %v663, %v659
      %v752 = vpack.c.b16 %v668, %v664
      %v753 = vpack.c.b16 %v669, %v665
      %v754 = vpack.c.b16 %v670, %v666
      %v755 = vpack.c.b16 %v671, %v667
      %v756 = vpack.c.b16 %v676, %v672
      %v757 = vpack.c.b16 %v677, %v673
      %v758 = vpack.c.b16 %v678, %v674
      %v759 = vpack.c.b16 %v679, %v675
      %v760 = vpack.c.b16 %v684, %v680
      %v761 = vpack.c.b16 %v685, %v681
      %v762 = vpack.c.b16 %v686, %v682
      %v763 = vpack.c.b16 %v687, %v683
      %v764 = vpack.c.b16 %v692, %v688
      %v765 = vpack.c.b16 %v693, %v689
      %v766 = vpack.c.b16 %v694, %v690
      %v767 = vpack.c.b16 %v695, %v691
      %v768 = vpack.c.b16 %v700, %v696
      %v769 = vpack.c.b16 %v701, %v697
      %v770 = vpack.c.b16 %v702, %v698
      %v771 = vpack.c.b16 %v703, %v699
      %v772 = vpack.c.b16 %v708, %v704
      %v773 = vpack.c.b16 %v709, %v705
      %v774 = vpack.c.b16 %v710, %v706
      %v775 = vpack.c.b16 %v711, %v707
      %840 = vmatpush.bf16.msra.mxu0 %v740
      %841 = vmatpush.bf16.msra.mxu0 %v736
      %842 = vmatpush.bf16.msra.mxu0 %v732
      %843 = vmatpush.bf16.msra.mxu0 %v728
      %844 = vmatpush.bf16.msra.mxu0 %v724
      %845 = vmatpush.bf16.msra.mxu0 %v720
      %846 = vmatpush.bf16.msra.mxu0 %v716
      %847 = vmatpush.bf16.msra.mxu0 %v712
      %848 = vmatmul.bf16.gmra.mxu0 %v383
      %v849 = vpop.f32.mrf.mxu0
      %v850 = vadd.f32 0.0, %v849
      %v851 = vpop.f32.mrf.mxu0
      %v852 = vadd.f32 0.0, %v851
      %853 = vmatmul.bf16.gmra.mxu0 %v386
      %v854 = vpop.f32.mrf.mxu0
      %v855 = vadd.f32 0.0, %v854
      %v856 = vpop.f32.mrf.mxu0
      %v857 = vadd.f32 0.0, %v856
      %858 = vmatmul.bf16.gmra.mxu0 %v507
      %v859 = vpop.f32.mrf.mxu0
      %v860 = vadd.f32 0.0, %v859
      %v861 = vpop.f32.mrf.mxu0
      %v862 = vadd.f32 0.0, %v861
      %863 = vmatmul.bf16.gmra.mxu0 %v510
      %v864 = vpop.f32.mrf.mxu0
      %v865 = vadd.f32 0.0, %v864
      %v866 = vpop.f32.mrf.mxu0
      %v867 = vadd.f32 0.0, %v866
      %868 = vdwg.mxu0
      %869 = vmatpush.bf16.msra.mxu0 %v772
      %870 = vmatpush.bf16.msra.mxu0 %v768
      %871 = vmatpush.bf16.msra.mxu0 %v764
      %872 = vmatpush.bf16.msra.mxu0 %v760
      %873 = vmatpush.bf16.msra.mxu0 %v756
      %874 = vmatpush.bf16.msra.mxu0 %v752
      %875 = vmatpush.bf16.msra.mxu0 %v748
      %876 = vmatpush.bf16.msra.mxu0 %v744
      %877 = vmatmul.bf16.gmra.mxu0 %v390
      %v878 = vpop.f32.mrf.mxu0
      %v879 = vadd.f32 %v850, %v878
      %v880 = vpop.f32.mrf.mxu0
      %v881 = vadd.f32 %v852, %v880
      %882 = vmatmul.bf16.gmra.mxu0 %v394
      %v883 = vpop.f32.mrf.mxu0
      %v884 = vadd.f32 %v855, %v883
      %v885 = vpop.f32.mrf.mxu0
      %v886 = vadd.f32 %v857, %v885
      %887 = vmatmul.bf16.gmra.mxu0 %v514
      %v888 = vpop.f32.mrf.mxu0
      %v889 = vadd.f32 %v860, %v888
      %v890 = vpop.f32.mrf.mxu0
      %v891 = vadd.f32 %v862, %v890
      %892 = vmatmul.bf16.gmra.mxu0 %v518
      %v893 = vpop.f32.mrf.mxu0
      %v894 = vadd.f32 %v865, %v893
      %v895 = vpop.f32.mrf.mxu0
      %v896 = vadd.f32 %v867, %v895
      %897 = vdwg.mxu0
      %898 = vmatpush.bf16.msra.mxu0 %v741
      %899 = vmatpush.bf16.msra.mxu0 %v737
      %900 = vmatpush.bf16.msra.mxu0 %v733
      %901 = vmatpush.bf16.msra.mxu0 %v729
      %902 = vmatpush.bf16.msra.mxu0 %v725
      %903 = vmatpush.bf16.msra.mxu0 %v721
      %904 = vmatpush.bf16.msra.mxu0 %v717
      %905 = vmatpush.bf16.msra.mxu0 %v713
      %906 = vmatmul.bf16.gmra.mxu0 %v383
      %v907 = vpop.f32.mrf.mxu0
      %v908 = vadd.f32 0.0, %v907
      %v909 = vpop.f32.mrf.mxu0
      %v910 = vadd.f32 0.0, %v909
      %911 = vmatmul.bf16.gmra.mxu0 %v386
      %v912 = vpop.f32.mrf.mxu0
      %v913 = vadd.f32 0.0, %v912
      %v914 = vpop.f32.mrf.mxu0
      %v915 = vadd.f32 0.0, %v914
      %916 = vmatmul.bf16.gmra.mxu0 %v507
      %v917 = vpop.f32.mrf.mxu0
      %v918 = vadd.f32 0.0, %v917
      %v919 = vpop.f32.mrf.mxu0
      %v920 = vadd.f32 0.0, %v919
      %921 = vmatmul.bf16.gmra.mxu0 %v510
      %v922 = vpop.f32.mrf.mxu0
      %v923 = vadd.f32 0.0, %v922
      %v924 = vpop.f32.mrf.mxu0
      %v925 = vadd.f32 0.0, %v924
      %926 = vdwg.mxu0
      %927 = vmatpush.bf16.msra.mxu0 %v773
      %928 = vmatpush.bf16.msra.mxu0 %v769
      %929 = vmatpush.bf16.msra.mxu0 %v765
      %930 = vmatpush.bf16.msra.mxu0 %v761
      %931 = vmatpush.bf16.msra.mxu0 %v757
      %932 = vmatpush.bf16.msra.mxu0 %v753
      %933 = vmatpush.bf16.msra.mxu0 %v749
      %934 = vmatpush.bf16.msra.mxu0 %v745
      %935 = vmatmul.bf16.gmra.mxu0 %v390
      %v936 = vpop.f32.mrf.mxu0
      %v937 = vadd.f32 %v908, %v936
      %v938 = vpop.f32.mrf.mxu0
      %v939 = vadd.f32 %v910, %v938
      %940 = vmatmul.bf16.gmra.mxu0 %v394
      %v941 = vpop.f32.mrf.mxu0
      %v942 = vadd.f32 %v913, %v941
      %v943 = vpop.f32.mrf.mxu0
      %v944 = vadd.f32 %v915, %v943
      %945 = vmatmul.bf16.gmra.mxu0 %v514
      %v946 = vpop.f32.mrf.mxu0
      %v947 = vadd.f32 %v918, %v946
      %v948 = vpop.f32.mrf.mxu0
      %v949 = vadd.f32 %v920, %v948
      %950 = vmatmul.bf16.gmra.mxu0 %v518
      %v951 = vpop.f32.mrf.mxu0
      %v952 = vadd.f32 %v923, %v951
      %v953 = vpop.f32.mrf.mxu0
      %v954 = vadd.f32 %v925, %v953
      %955 = vdwg.mxu0
      %956 = vmatpush.bf16.msra.mxu0 %v742
      %957 = vmatpush.bf16.msra.mxu0 %v738
      %958 = vmatpush.bf16.msra.mxu0 %v734
      %959 = vmatpush.bf16.msra.mxu0 %v730
      %960 = vmatpush.bf16.msra.mxu0 %v726
      %961 = vmatpush.bf16.msra.mxu0 %v722
      %962 = vmatpush.bf16.msra.mxu0 %v718
      %963 = vmatpush.bf16.msra.mxu0 %v714
      %964 = vmatmul.bf16.gmra.mxu0 %v383
      %v965 = vpop.f32.mrf.mxu0
      %v966 = vadd.f32 0.0, %v965
      %v967 = vpop.f32.mrf.mxu0
      %v968 = vadd.f32 0.0, %v967
      %969 = vmatmul.bf16.gmra.mxu0 %v386
      %v970 = vpop.f32.mrf.mxu0
      %v971 = vadd.f32 0.0, %v970
      %v972 = vpop.f32.mrf.mxu0
      %v973 = vadd.f32 0.0, %v972
      %974 = vmatmul.bf16.gmra.mxu0 %v507
      %v975 = vpop.f32.mrf.mxu0
      %v976 = vadd.f32 0.0, %v975
      %v977 = vpop.f32.mrf.mxu0
      %v978 = vadd.f32 0.0, %v977
      %979 = vmatmul.bf16.gmra.mxu0 %v510
      %v980 = vpop.f32.mrf.mxu0
      %v981 = vadd.f32 0.0, %v980
      %v982 = vpop.f32.mrf.mxu0
      %v983 = vadd.f32 0.0, %v982
      %984 = vdwg.mxu0
      %985 = vmatpush.bf16.msra.mxu0 %v774
      %986 = vmatpush.bf16.msra.mxu0 %v770
      %987 = vmatpush.bf16.msra.mxu0 %v766
      %988 = vmatpush.bf16.msra.mxu0 %v762
      %989 = vmatpush.bf16.msra.mxu0 %v758
      %990 = vmatpush.bf16.msra.mxu0 %v754
      %991 = vmatpush.bf16.msra.mxu0 %v750
      %992 = vmatpush.bf16.msra.mxu0 %v746
      %993 = vmatmul.bf16.gmra.mxu0 %v390
      %v994 = vpop.f32.mrf.mxu0
      %v995 = vadd.f32 %v966, %v994
      %v996 = vpop.f32.mrf.mxu0
      %v997 = vadd.f32 %v968, %v996
      %998 = vmatmul.bf16.gmra.mxu0 %v394
      %v999 = vpop.f32.mrf.mxu0
      %v1000 = vadd.f32 %v971, %v999
      %v1001 = vpop.f32.mrf.mxu0
      %v1002 = vadd.f32 %v973, %v1001
      %1003 = vmatmul.bf16.gmra.mxu0 %v514
      %v1004 = vpop.f32.mrf.mxu0
      %v1005 = vadd.f32 %v976, %v1004
      %v1006 = vpop.f32.mrf.mxu0
      %v1007 = vadd.f32 %v978, %v1006
      %1008 = vmatmul.bf16.gmra.mxu0 %v518
      %v1009 = vpop.f32.mrf.mxu0
      %v1010 = vadd.f32 %v981, %v1009
      %v1011 = vpop.f32.mrf.mxu0
      %v1012 = vadd.f32 %v983, %v1011
      %1013 = vdwg.mxu0
      %1014 = vmatpush.bf16.msra.mxu0 %v743
      %1015 = vmatpush.bf16.msra.mxu0 %v739
      %1016 = vmatpush.bf16.msra.mxu0 %v735
      %1017 = vmatpush.bf16.msra.mxu0 %v731
      %1018 = vmatpush.bf16.msra.mxu0 %v727
      %1019 = vmatpush.bf16.msra.mxu0 %v723
      %1020 = vmatpush.bf16.msra.mxu0 %v719
      %1021 = vmatpush.bf16.msra.mxu0 %v715
      %1022 = vmatmul.bf16.gmra.mxu0 %v383
      %v1023 = vpop.f32.mrf.mxu0
      %v1024 = vadd.f32 0.0, %v1023
      %v1025 = vpop.f32.mrf.mxu0
      %v1026 = vadd.f32 0.0, %v1025
      %1027 = vmatmul.bf16.gmra.mxu0 %v386
      %v1028 = vpop.f32.mrf.mxu0
      %v1029 = vadd.f32 0.0, %v1028
      %v1030 = vpop.f32.mrf.mxu0
      %v1031 = vadd.f32 0.0, %v1030
      %1032 = vmatmul.bf16.gmra.mxu0 %v507
      %v1033 = vpop.f32.mrf.mxu0
      %v1034 = vadd.f32 0.0, %v1033
      %v1035 = vpop.f32.mrf.mxu0
      %v1036 = vadd.f32 0.0, %v1035
      %1037 = vmatmul.bf16.gmra.mxu0 %v510
      %v1038 = vpop.f32.mrf.mxu0
      %v1039 = vadd.f32 0.0, %v1038
      %v1040 = vpop.f32.mrf.mxu0
      %v1041 = vadd.f32 0.0, %v1040
      %1042 = vdwg.mxu0
      %1043 = vmatpush.bf16.msra.mxu0 %v775
      %1044 = vmatpush.bf16.msra.mxu0 %v771
      %1045 = vmatpush.bf16.msra.mxu0 %v767
      %1046 = vmatpush.bf16.msra.mxu0 %v763
      %1047 = vmatpush.bf16.msra.mxu0 %v759
      %1048 = vmatpush.bf16.msra.mxu0 %v755
      %1049 = vmatpush.bf16.msra.mxu0 %v751
      %1050 = vmatpush.bf16.msra.mxu0 %v747
      %1051 = vmatmul.bf16.gmra.mxu0 %v390
      %v1052 = vpop.f32.mrf.mxu0
      %v1053 = vadd.f32 %v1024, %v1052
      %v1054 = vpop.f32.mrf.mxu0
      %v1055 = vadd.f32 %v1026, %v1054
      %1056 = vmatmul.bf16.gmra.mxu0 %v394
      %v1057 = vpop.f32.mrf.mxu0
      %v1058 = vadd.f32 %v1029, %v1057
      %v1059 = vpop.f32.mrf.mxu0
      %v1060 = vadd.f32 %v1031, %v1059
      %1061 = vmatmul.bf16.gmra.mxu0 %v514
      %v1062 = vpop.f32.mrf.mxu0
      %v1063 = vadd.f32 %v1034, %v1062
      %v1064 = vpop.f32.mrf.mxu0
      %v1065 = vadd.f32 %v1036, %v1064
      %1066 = vmatmul.bf16.gmra.mxu0 %v518
      %v1067 = vpop.f32.mrf.mxu0
      %v1068 = vadd.f32 %v1039, %v1067
      %v1069 = vpop.f32.mrf.mxu0
      %v1070 = vadd.f32 %v1041, %v1069
      %1071 = vdwg.mxu0
      %v1072 = vmul.f32 %v879, %v879
      %v1073 = vmul.f32 %v937, %v937
      %v1074 = vmul.f32 %v881, %v881
      %v1075 = vmul.f32 %v939, %v939
      %v1076 = vmul.f32 %v884, %v884
      %v1077 = vmul.f32 %v942, %v942
      %v1078 = vmul.f32 %v886, %v886
      %v1079 = vmul.f32 %v944, %v944
      %v1080 = vmul.f32 %v889, %v889
      %v1081 = vmul.f32 %v947, %v947
      %v1082 = vmul.f32 %v891, %v891
      %v1083 = vmul.f32 %v949, %v949
      %v1084 = vmul.f32 %v894, %v894
      %v1085 = vmul.f32 %v952, %v952
      %v1086 = vmul.f32 %v896, %v896
      %v1087 = vmul.f32 %v954, %v954
      %v1088 = vmul.f32 %v995, %v995
      %v1089 = vmul.f32 %v1053, %v1053
      %v1090 = vmul.f32 %v997, %v997
      %v1091 = vmul.f32 %v1055, %v1055
      %v1092 = vmul.f32 %v1000, %v1000
      %v1093 = vmul.f32 %v1058, %v1058
      %v1094 = vmul.f32 %v1002, %v1002
      %v1095 = vmul.f32 %v1060, %v1060
      %v1096 = vmul.f32 %v1005, %v1005
      %v1097 = vmul.f32 %v1063, %v1063
      %v1098 = vmul.f32 %v1007, %v1007
      %v1099 = vmul.f32 %v1065, %v1065
      %v1100 = vmul.f32 %v1010, %v1010
      %v1101 = vmul.f32 %v1068, %v1068
      %v1102 = vmul.f32 %v1012, %v1012
      %v1103 = vmul.f32 %v1070, %v1070
      %v1104 = vadd.f32 %v1072, %v1088
      %v1105 = vadd.f32 %v1073, %v1089
      %v1106 = vadd.f32 %v1074, %v1090
      %v1107 = vadd.f32 %v1075, %v1091
      %v1108 = vadd.f32 %v1076, %v1092
      %v1109 = vadd.f32 %v1077, %v1093
      %v1110 = vadd.f32 %v1078, %v1094
      %v1111 = vadd.f32 %v1079, %v1095
      %v1112 = vadd.f32 %v1080, %v1096
      %v1113 = vadd.f32 %v1081, %v1097
      %v1114 = vadd.f32 %v1082, %v1098
      %v1115 = vadd.f32 %v1083, %v1099
      %v1116 = vadd.f32 %v1084, %v1100
      %v1117 = vadd.f32 %v1085, %v1101
      %v1118 = vadd.f32 %v1086, %v1102
      %v1119 = vadd.f32 %v1087, %v1103
      %v1120 = vrsqrt.pop %v1104
      %v1121 = vmul.f32 %v1120, %v1104
      %v1122 = vmul.f32 %v1121, %v1120
      %v1123 = vmul.f32 0.5, %v1122
      %v1124 = vsub.f32 1.5, %v1123
      %v1125 = vmul.f32 %v1120, %v1124
      %v1126 = vmul.f32 %v1104, %v1125
      %vm1127 = vcmp.eq.f32.partialorder %v1104, inf
      %v1128 = vsel %vm1127, %v1104, %v1126
      %vm1129 = vcmp.eq.f32.partialorder %v1104, 0.0
      %v1130 = vand.u32 %v1104, 2147483648
      %v1131 = vsel %vm1129, %v1130, %v1128
      %v1132 = vrsqrt.pop %v1105
      %v1133 = vmul.f32 %v1132, %v1105
      %v1134 = vmul.f32 %v1133, %v1132
      %v1135 = vmul.f32 0.5, %v1134
      %v1136 = vsub.f32 1.5, %v1135
      %v1137 = vmul.f32 %v1132, %v1136
      %v1138 = vmul.f32 %v1105, %v1137
      %vm1139 = vcmp.eq.f32.partialorder %v1105, inf
      %v1140 = vsel %vm1139, %v1105, %v1138
      %vm1141 = vcmp.eq.f32.partialorder %v1105, 0.0
      %v1142 = vand.u32 %v1105, 2147483648
      %v1143 = vsel %vm1141, %v1142, %v1140
      %v1144 = vrsqrt.pop %v1106
      %v1145 = vmul.f32 %v1144, %v1106
      %v1146 = vmul.f32 %v1145, %v1144
      %v1147 = vmul.f32 0.5, %v1146
      %v1148 = vsub.f32 1.5, %v1147
      %v1149 = vmul.f32 %v1144, %v1148
      %v1150 = vmul.f32 %v1106, %v1149
      %vm1151 = vcmp.eq.f32.partialorder %v1106, inf
      %v1152 = vsel %vm1151, %v1106, %v1150
      %vm1153 = vcmp.eq.f32.partialorder %v1106, 0.0
      %v1154 = vand.u32 %v1106, 2147483648
      %v1155 = vsel %vm1153, %v1154, %v1152
      %v1156 = vrsqrt.pop %v1107
      %v1157 = vmul.f32 %v1156, %v1107
      %v1158 = vmul.f32 %v1157, %v1156
      %v1159 = vmul.f32 0.5, %v1158
      %v1160 = vsub.f32 1.5, %v1159
      %v1161 = vmul.f32 %v1156, %v1160
      %v1162 = vmul.f32 %v1107, %v1161
      %vm1163 = vcmp.eq.f32.partialorder %v1107, inf
      %v1164 = vsel %vm1163, %v1107, %v1162
      %vm1165 = vcmp.eq.f32.partialorder %v1107, 0.0
      %v1166 = vand.u32 %v1107, 2147483648
      %v1167 = vsel %vm1165, %v1166, %v1164
      %v1168 = vrsqrt.pop %v1108
      %v1169 = vmul.f32 %v1168, %v1108
      %v1170 = vmul.f32 %v1169, %v1168
      %v1171 = vmul.f32 0.5, %v1170
      %v1172 = vsub.f32 1.5, %v1171
      %v1173 = vmul.f32 %v1168, %v1172
      %v1174 = vmul.f32 %v1108, %v1173
      %vm1175 = vcmp.eq.f32.partialorder %v1108, inf
      %v1176 = vsel %vm1175, %v1108, %v1174
      %vm1177 = vcmp.eq.f32.partialorder %v1108, 0.0
      %v1178 = vand.u32 %v1108, 2147483648
      %v1179 = vsel %vm1177, %v1178, %v1176
      %v1180 = vrsqrt.pop %v1109
      %v1181 = vmul.f32 %v1180, %v1109
      %v1182 = vmul.f32 %v1181, %v1180
      %v1183 = vmul.f32 0.5, %v1182
      %v1184 = vsub.f32 1.5, %v1183
      %v1185 = vmul.f32 %v1180, %v1184
      %v1186 = vmul.f32 %v1109, %v1185
      %vm1187 = vcmp.eq.f32.partialorder %v1109, inf
      %v1188 = vsel %vm1187, %v1109, %v1186
      %vm1189 = vcmp.eq.f32.partialorder %v1109, 0.0
      %v1190 = vand.u32 %v1109, 2147483648
      %v1191 = vsel %vm1189, %v1190, %v1188
      %v1192 = vrsqrt.pop %v1110
      %v1193 = vmul.f32 %v1192, %v1110
      %v1194 = vmul.f32 %v1193, %v1192
      %v1195 = vmul.f32 0.5, %v1194
      %v1196 = vsub.f32 1.5, %v1195
      %v1197 = vmul.f32 %v1192, %v1196
      %v1198 = vmul.f32 %v1110, %v1197
      %vm1199 = vcmp.eq.f32.partialorder %v1110, inf
      %v1200 = vsel %vm1199, %v1110, %v1198
      %vm1201 = vcmp.eq.f32.partialorder %v1110, 0.0
      %v1202 = vand.u32 %v1110, 2147483648
      %v1203 = vsel %vm1201, %v1202, %v1200
      %v1204 = vrsqrt.pop %v1111
      %v1205 = vmul.f32 %v1204, %v1111
      %v1206 = vmul.f32 %v1205, %v1204
      %v1207 = vmul.f32 0.5, %v1206
      %v1208 = vsub.f32 1.5, %v1207
      %v1209 = vmul.f32 %v1204, %v1208
      %v1210 = vmul.f32 %v1111, %v1209
      %vm1211 = vcmp.eq.f32.partialorder %v1111, inf
      %v1212 = vsel %vm1211, %v1111, %v1210
      %vm1213 = vcmp.eq.f32.partialorder %v1111, 0.0
      %v1214 = vand.u32 %v1111, 2147483648
      %v1215 = vsel %vm1213, %v1214, %v1212
      %v1216 = vrsqrt.pop %v1112
      %v1217 = vmul.f32 %v1216, %v1112
      %v1218 = vmul.f32 %v1217, %v1216
      %v1219 = vmul.f32 0.5, %v1218
      %v1220 = vsub.f32 1.5, %v1219
      %v1221 = vmul.f32 %v1216, %v1220
      %v1222 = vmul.f32 %v1112, %v1221
      %vm1223 = vcmp.eq.f32.partialorder %v1112, inf
      %v1224 = vsel %vm1223, %v1112, %v1222
      %vm1225 = vcmp.eq.f32.partialorder %v1112, 0.0
      %v1226 = vand.u32 %v1112, 2147483648
      %v1227 = vsel %vm1225, %v1226, %v1224
      %v1228 = vrsqrt.pop %v1113
      %v1229 = vmul.f32 %v1228, %v1113
      %v1230 = vmul.f32 %v1229, %v1228
      %v1231 = vmul.f32 0.5, %v1230
      %v1232 = vsub.f32 1.5, %v1231
      %v1233 = vmul.f32 %v1228, %v1232
      %v1234 = vmul.f32 %v1113, %v1233
      %vm1235 = vcmp.eq.f32.partialorder %v1113, inf
      %v1236 = vsel %vm1235, %v1113, %v1234
      %vm1237 = vcmp.eq.f32.partialorder %v1113, 0.0
      %v1238 = vand.u32 %v1113, 2147483648
      %v1239 = vsel %vm1237, %v1238, %v1236
      %v1240 = vrsqrt.pop %v1114
      %v1241 = vmul.f32 %v1240, %v1114
      %v1242 = vmul.f32 %v1241, %v1240
      %v1243 = vmul.f32 0.5, %v1242
      %v1244 = vsub.f32 1.5, %v1243
      %v1245 = vmul.f32 %v1240, %v1244
      %v1246 = vmul.f32 %v1114, %v1245
      %vm1247 = vcmp.eq.f32.partialorder %v1114, inf
      %v1248 = vsel %vm1247, %v1114, %v1246
      %vm1249 = vcmp.eq.f32.partialorder %v1114, 0.0
      %v1250 = vand.u32 %v1114, 2147483648
      %v1251 = vsel %vm1249, %v1250, %v1248
      %v1252 = vrsqrt.pop %v1115
      %v1253 = vmul.f32 %v1252, %v1115
      %v1254 = vmul.f32 %v1253, %v1252
      %v1255 = vmul.f32 0.5, %v1254
      %v1256 = vsub.f32 1.5, %v1255
      %v1257 = vmul.f32 %v1252, %v1256
      %v1258 = vmul.f32 %v1115, %v1257
      %vm1259 = vcmp.eq.f32.partialorder %v1115, inf
      %v1260 = vsel %vm1259, %v1115, %v1258
      %vm1261 = vcmp.eq.f32.partialorder %v1115, 0.0
      %v1262 = vand.u32 %v1115, 2147483648
      %v1263 = vsel %vm1261, %v1262, %v1260
      %v1264 = vrsqrt.pop %v1116
      %v1265 = vmul.f32 %v1264, %v1116
      %v1266 = vmul.f32 %v1265, %v1264
      %v1267 = vmul.f32 0.5, %v1266
      %v1268 = vsub.f32 1.5, %v1267
      %v1269 = vmul.f32 %v1264, %v1268
      %v1270 = vmul.f32 %v1116, %v1269
      %vm1271 = vcmp.eq.f32.partialorder %v1116, inf
      %v1272 = vsel %vm1271, %v1116, %v1270
      %vm1273 = vcmp.eq.f32.partialorder %v1116, 0.0
      %v1274 = vand.u32 %v1116, 2147483648
      %v1275 = vsel %vm1273, %v1274, %v1272
      %v1276 = vrsqrt.pop %v1117
      %v1277 = vmul.f32 %v1276, %v1117
      %v1278 = vmul.f32 %v1277, %v1276
      %v1279 = vmul.f32 0.5, %v1278
      %v1280 = vsub.f32 1.5, %v1279
      %v1281 = vmul.f32 %v1276, %v1280
      %v1282 = vmul.f32 %v1117, %v1281
      %vm1283 = vcmp.eq.f32.partialorder %v1117, inf
      %v1284 = vsel %vm1283, %v1117, %v1282
      %vm1285 = vcmp.eq.f32.partialorder %v1117, 0.0
      %v1286 = vand.u32 %v1117, 2147483648
      %v1287 = vsel %vm1285, %v1286, %v1284
      %v1288 = vrsqrt.pop %v1118
      %v1289 = vmul.f32 %v1288, %v1118
      %v1290 = vmul.f32 %v1289, %v1288
      %v1291 = vmul.f32 0.5, %v1290
      %v1292 = vsub.f32 1.5, %v1291
      %v1293 = vmul.f32 %v1288, %v1292
      %v1294 = vmul.f32 %v1118, %v1293
      %vm1295 = vcmp.eq.f32.partialorder %v1118, inf
      %v1296 = vsel %vm1295, %v1118, %v1294
      %vm1297 = vcmp.eq.f32.partialorder %v1118, 0.0
      %v1298 = vand.u32 %v1118, 2147483648
      %v1299 = vsel %vm1297, %v1298, %v1296
      %v1300 = vrsqrt.pop %v1119
      %v1301 = vmul.f32 %v1300, %v1119
      %v1302 = vmul.f32 %v1301, %v1300
      %v1303 = vmul.f32 0.5, %v1302
      %v1304 = vsub.f32 1.5, %v1303
      %v1305 = vmul.f32 %v1300, %v1304
      %v1306 = vmul.f32 %v1119, %v1305
      %vm1307 = vcmp.eq.f32.partialorder %v1119, inf
      %v1308 = vsel %vm1307, %v1119, %v1306
      %vm1309 = vcmp.eq.f32.partialorder %v1119, 0.0
      %v1310 = vand.u32 %v1119, 2147483648
      %v1311 = vsel %vm1309, %v1310, %v1308
      %v1312 = vadd.f32 %v1131, 1e-07
      %v1313 = vadd.f32 %v1143, 1e-07
      %v1314 = vadd.f32 %v1155, 1e-07
      %v1315 = vadd.f32 %v1167, 1e-07
      %v1316 = vadd.f32 %v1179, 1e-07
      %v1317 = vadd.f32 %v1191, 1e-07
      %v1318 = vadd.f32 %v1203, 1e-07
      %v1319 = vadd.f32 %v1215, 1e-07
      %v1320 = vadd.f32 %v1227, 1e-07
      %v1321 = vadd.f32 %v1239, 1e-07
      %v1322 = vadd.f32 %v1251, 1e-07
      %v1323 = vadd.f32 %v1263, 1e-07
      %v1324 = vadd.f32 %v1275, 1e-07
      %v1325 = vadd.f32 %v1287, 1e-07
      %v1326 = vadd.f32 %v1299, 1e-07
      %v1327 = vadd.f32 %v1311, 1e-07
      %v1328 = vsub.f32 %v1312, %v1320
      %v1329 = vsub.f32 %v1313, %v1321
      %v1330 = vsub.f32 %v1314, %v1322
      %v1331 = vsub.f32 %v1315, %v1323
      %v1332 = vsub.f32 %v1316, %v1324
      %v1333 = vsub.f32 %v1317, %v1325
      %v1334 = vsub.f32 %v1318, %v1326
      %v1335 = vsub.f32 %v1319, %v1327
      %v1336 = vadd.f32 %v1312, %v1320
      %v1337 = vadd.f32 %v1313, %v1321
      %v1338 = vadd.f32 %v1314, %v1322
      %v1339 = vadd.f32 %v1315, %v1323
      %v1340 = vadd.f32 %v1316, %v1324
      %v1341 = vadd.f32 %v1317, %v1325
      %v1342 = vadd.f32 %v1318, %v1326
      %v1343 = vadd.f32 %v1319, %v1327
      %v1344 = vlog2.pop %v1312
      %v1345 = vmul.f32 %v1344, 0.6931472
      %v1346 = vlog2.pop %v1313
      %v1347 = vmul.f32 %v1346, 0.6931472
      %v1348 = vlog2.pop %v1314
      %v1349 = vmul.f32 %v1348, 0.6931472
      %v1350 = vlog2.pop %v1315
      %v1351 = vmul.f32 %v1350, 0.6931472
      %v1352 = vlog2.pop %v1316
      %v1353 = vmul.f32 %v1352, 0.6931472
      %v1354 = vlog2.pop %v1317
      %v1355 = vmul.f32 %v1354, 0.6931472
      %v1356 = vlog2.pop %v1318
      %v1357 = vmul.f32 %v1356, 0.6931472
      %v1358 = vlog2.pop %v1319
      %v1359 = vmul.f32 %v1358, 0.6931472
      %v1360 = vlog2.pop %v1320
      %v1361 = vmul.f32 %v1360, 0.6931472
      %v1362 = vlog2.pop %v1321
      %v1363 = vmul.f32 %v1362, 0.6931472
      %v1364 = vlog2.pop %v1322
      %v1365 = vmul.f32 %v1364, 0.6931472
      %v1366 = vlog2.pop %v1323
      %v1367 = vmul.f32 %v1366, 0.6931472
      %v1368 = vlog2.pop %v1324
      %v1369 = vmul.f32 %v1368, 0.6931472
      %v1370 = vlog2.pop %v1325
      %v1371 = vmul.f32 %v1370, 0.6931472
      %v1372 = vlog2.pop %v1326
      %v1373 = vmul.f32 %v1372, 0.6931472
      %v1374 = vlog2.pop %v1327
      %v1375 = vmul.f32 %v1374, 0.6931472
      %v1376 = vsub.f32 %v1345, %v1361
      %v1377 = vsub.f32 %v1347, %v1363
      %v1378 = vsub.f32 %v1349, %v1365
      %v1379 = vsub.f32 %v1351, %v1367
      %v1380 = vsub.f32 %v1353, %v1369
      %v1381 = vsub.f32 %v1355, %v1371
      %v1382 = vsub.f32 %v1357, %v1373
      %v1383 = vsub.f32 %v1359, %v1375
      %v1384 = vand.u32 2147483647, %v1376
      %v1385 = vand.u32 2147483647, %v1377
      %v1386 = vand.u32 2147483647, %v1378
      %v1387 = vand.u32 2147483647, %v1379
      %v1388 = vand.u32 2147483647, %v1380
      %v1389 = vand.u32 2147483647, %v1381
      %v1390 = vand.u32 2147483647, %v1382
      %v1391 = vand.u32 2147483647, %v1383
      %v1392 = vlaneseq
      %v1393 = vshrl.u32 %v1392, 7
      %v1394 = vadd.s32 %v1393, 8
      %vm1395 = vcmp.lt.s32.totalorder %v1393, 13
      %vm1396 = vcmp.lt.s32.totalorder %v1394, 13
      %v1397 = vsel %vm1395, 1, 0
      %v1398 = vsel %vm1396, 1, 0
      %v1399 = vcvt.s32.f32 %v1397
      %v1400 = vcvt.s32.f32 %v1398
      %v1401 = vmul.f32 %v1399, %v1328
      %v1402 = vmul.f32 %v1399, %v1329
      %v1403 = vmul.f32 %v1400, %v1330
      %v1404 = vmul.f32 %v1400, %v1331
      %v1405 = vmul.f32 %v1399, %v1332
      %v1406 = vmul.f32 %v1399, %v1333
      %v1407 = vmul.f32 %v1400, %v1334
      %v1408 = vmul.f32 %v1400, %v1335
      %v1409 = vmul.f32 %v1401, %v1328
      %v1410 = vmul.f32 %v1402, %v1329
      %v1411 = vmul.f32 %v1403, %v1330
      %v1412 = vmul.f32 %v1404, %v1331
      %v1413 = vmul.f32 %v1405, %v1332
      %v1414 = vmul.f32 %v1406, %v1333
      %v1415 = vmul.f32 %v1407, %v1334
      %v1416 = vmul.f32 %v1408, %v1335
      %v1417 = vadd.f32 %v1409, %v1411
      %v1418 = vrot.slane %v1417, 4
      %v1419 = vadd.f32 %v1417, %v1418
      %v1420 = vrot.slane %v1419, 2
      %v1421 = vadd.f32 %v1419, %v1420
      %v1422 = vrot.slane %v1421, 1
      %v1423 = vadd.f32 %v1421, %v1422
      %v1424 = vadd.f32 %v1410, %v1412
      %v1425 = vrot.slane %v1424, 4
      %v1426 = vadd.f32 %v1424, %v1425
      %v1427 = vrot.slane %v1426, 2
      %v1428 = vadd.f32 %v1426, %v1427
      %v1429 = vrot.slane %v1428, 1
      %v1430 = vadd.f32 %v1428, %v1429
      %v1431 = vadd.f32 %v1413, %v1415
      %v1432 = vrot.slane %v1431, 4
      %v1433 = vadd.f32 %v1431, %v1432
      %v1434 = vrot.slane %v1433, 2
      %v1435 = vadd.f32 %v1433, %v1434
      %v1436 = vrot.slane %v1435, 1
      %v1437 = vadd.f32 %v1435, %v1436
      %v1438 = vadd.f32 %v1414, %v1416
      %v1439 = vrot.slane %v1438, 4
      %v1440 = vadd.f32 %v1438, %v1439
      %v1441 = vrot.slane %v1440, 2
      %v1442 = vadd.f32 %v1440, %v1441
      %v1443 = vrot.slane %v1442, 1
      %v1444 = vadd.f32 %v1442, %v1443
      %v1445 = vadd.f32 %v1423, 0.0
      %v1446 = vadd.f32 %v1430, 0.0
      %v1447 = vadd.f32 %v1437, 0.0
      %v1448 = vadd.f32 %v1444, 0.0
      %v1449 = vmul.f32 %v1399, %v1336
      %v1450 = vmul.f32 %v1399, %v1337
      %v1451 = vmul.f32 %v1400, %v1338
      %v1452 = vmul.f32 %v1400, %v1339
      %v1453 = vmul.f32 %v1399, %v1340
      %v1454 = vmul.f32 %v1399, %v1341
      %v1455 = vmul.f32 %v1400, %v1342
      %v1456 = vmul.f32 %v1400, %v1343
      %v1457 = vmul.f32 %v1449, %v1336
      %v1458 = vmul.f32 %v1450, %v1337
      %v1459 = vmul.f32 %v1451, %v1338
      %v1460 = vmul.f32 %v1452, %v1339
      %v1461 = vmul.f32 %v1453, %v1340
      %v1462 = vmul.f32 %v1454, %v1341
      %v1463 = vmul.f32 %v1455, %v1342
      %v1464 = vmul.f32 %v1456, %v1343
      %v1465 = vadd.f32 %v1457, %v1459
      %v1466 = vrot.slane %v1465, 4
      %v1467 = vadd.f32 %v1465, %v1466
      %v1468 = vrot.slane %v1467, 2
      %v1469 = vadd.f32 %v1467, %v1468
      %v1470 = vrot.slane %v1469, 1
      %v1471 = vadd.f32 %v1469, %v1470
      %v1472 = vadd.f32 %v1458, %v1460
      %v1473 = vrot.slane %v1472, 4
      %v1474 = vadd.f32 %v1472, %v1473
      %v1475 = vrot.slane %v1474, 2
      %v1476 = vadd.f32 %v1474, %v1475
      %v1477 = vrot.slane %v1476, 1
      %v1478 = vadd.f32 %v1476, %v1477
      %v1479 = vadd.f32 %v1461, %v1463
      %v1480 = vrot.slane %v1479, 4
      %v1481 = vadd.f32 %v1479, %v1480
      %v1482 = vrot.slane %v1481, 2
      %v1483 = vadd.f32 %v1481, %v1482
      %v1484 = vrot.slane %v1483, 1
      %v1485 = vadd.f32 %v1483, %v1484
      %v1486 = vadd.f32 %v1462, %v1464
      %v1487 = vrot.slane %v1486, 4
      %v1488 = vadd.f32 %v1486, %v1487
      %v1489 = vrot.slane %v1488, 2
      %v1490 = vadd.f32 %v1488, %v1489
      %v1491 = vrot.slane %v1490, 1
      %v1492 = vadd.f32 %v1490, %v1491
      %v1493 = vadd.f32 %v1471, 0.0
      %v1494 = vadd.f32 %v1478, 0.0
      %v1495 = vadd.f32 %v1485, 0.0
      %v1496 = vadd.f32 %v1492, 0.0
      %v1497 = vmul.f32 %v1399, %v1384
      %v1498 = vmul.f32 %v1399, %v1385
      %v1499 = vmul.f32 %v1400, %v1386
      %v1500 = vmul.f32 %v1400, %v1387
      %v1501 = vmul.f32 %v1399, %v1388
      %v1502 = vmul.f32 %v1399, %v1389
      %v1503 = vmul.f32 %v1400, %v1390
      %v1504 = vmul.f32 %v1400, %v1391
      %v1505 = vadd.f32 %v1497, %v1499
      %v1506 = vrot.slane %v1505, 4
      %v1507 = vadd.f32 %v1505, %v1506
      %v1508 = vrot.slane %v1507, 2
      %v1509 = vadd.f32 %v1507, %v1508
      %v1510 = vrot.slane %v1509, 1
      %v1511 = vadd.f32 %v1509, %v1510
      %v1512 = vadd.f32 %v1498, %v1500
      %v1513 = vrot.slane %v1512, 4
      %v1514 = vadd.f32 %v1512, %v1513
      %v1515 = vrot.slane %v1514, 2
      %v1516 = vadd.f32 %v1514, %v1515
      %v1517 = vrot.slane %v1516, 1
      %v1518 = vadd.f32 %v1516, %v1517
      %v1519 = vadd.f32 %v1501, %v1503
      %v1520 = vrot.slane %v1519, 4
      %v1521 = vadd.f32 %v1519, %v1520
      %v1522 = vrot.slane %v1521, 2
      %v1523 = vadd.f32 %v1521, %v1522
      %v1524 = vrot.slane %v1523, 1
      %v1525 = vadd.f32 %v1523, %v1524
      %v1526 = vadd.f32 %v1502, %v1504
      %v1527 = vrot.slane %v1526, 4
      %v1528 = vadd.f32 %v1526, %v1527
      %v1529 = vrot.slane %v1528, 2
      %v1530 = vadd.f32 %v1528, %v1529
      %v1531 = vrot.slane %v1530, 1
      %v1532 = vadd.f32 %v1530, %v1531
      %v1533 = vadd.f32 %v1511, 0.0
      %v1534 = vadd.f32 %v1518, 0.0
      %v1535 = vadd.f32 %v1525, 0.0
      %v1536 = vadd.f32 %v1532, 0.0
      %v1541 = vrot.slane %v1446, 7
      %v1542 = vrot.slane %v1448, 7
      %vm1543 = vcmask 1040384
      %v1544 = vsel %vm1543, %v1445, %v1541
      %v1545 = vsel %vm1543, %v1447, %v1542
      %v1548 = vlaneseq
      %vm1549 = vcmp.ge.s32.totalorder %v1548, 0
      %vm1550 = vcmp.lt.s32.totalorder %v1548, 256
      %vm1551 = vmand %vm1549, %vm1550
      %1552 = vst.msk [vmem:[%s202] ss:$4 sm:$0x3] %vm1551, %v1544
      %s1553 = scalar_lea.vmem %s202, 8
      %1554 = vst.msk [vmem:[%s1553] ss:$4 sm:$0x3] %vm1551, %v1545
      %v1559 = vrot.slane %v1494, 7
      %v1560 = vrot.slane %v1496, 7
      %v1561 = vsel %vm1543, %v1493, %v1559
      %v1562 = vsel %vm1543, %v1495, %v1560
      %s1565 = scalar_lea.vmem %s202, 1
      %1566 = vst.msk [vmem:[%s1565] ss:$4 sm:$0x3] %vm1551, %v1561
      %s1567 = scalar_lea.vmem %s202, 9
      %1568 = vst.msk [vmem:[%s1567] ss:$4 sm:$0x3] %vm1551, %v1562
      %v1573 = vrot.slane %v1534, 7
      %v1574 = vrot.slane %v1536, 7
      %v1575 = vsel %vm1543, %v1533, %v1573
      %v1576 = vsel %vm1543, %v1535, %v1574
      %s1579 = scalar_lea.vmem %s202, 2
      %1580 = vst.msk [vmem:[%s1579] ss:$4 sm:$0x3] %vm1551, %v1575
      %s1581 = scalar_lea.vmem %s202, 10
      %1582 = vst.msk [vmem:[%s1581] ss:$4 sm:$0x3] %vm1551, %v1576
      %s1583 = smul.u32 2, %s14
      %p1584 = scmp.lt.s32.totalorder %s1583, 3
      %s1585 = scalar_select %p1584, %s1583, 3
      %s1586 = smul.addr %s1585, 2
      %s1587 = smul.addr %s1586, 4
      %s1588 = scalar_lea.vmem %s3, %s1587
      // Predicated region
      $region33: #{mss_loss.2} parent=31 // pred_check
        %p1589 = pneg %p105
      $region34: #{mss_loss.2} parent=31 // pred_check_branch
        %1591 = sbr.rel (%p1589) target = $region36
      $region35: #{mss_loss.2} parent=31 // pred_region
        %s1592 = smul.u32 2, %s14
      $region36: #{mss_loss.2} parent=31 // pred_fallthru
        _
    $region32: #{mss_loss.2} parent=5 // pred_fallthru
      _
    %p1593 = scmp.le.s32.totalorder 2, %s9
    // Predicated region
    $region37: #{mss_loss.2} parent=5 // pred_check
      %p1594 = pneg %p1593
    $region38: #{mss_loss.2} parent=5 // pred_check_branch
      %1596 = sbr.rel (%p1594) target = $region40
    $region39: #{mss_loss.2} parent=5 // pred_region
      %s1597 = ssub.s32 %s9, 2
      // Predicated region
      $region41: #{mss_loss.2} parent=39 // pred_check
        %p1598 = pneg %p111
      $region42: #{mss_loss.2} parent=39 // pred_check_branch
        %1600 = sbr.rel (%p1598) target = $region44
      $region43: #{mss_loss.2} parent=39 // pred_region
        %s1601 = smul.u32 2, %s15
        %p1602 = scmp.lt.s32.totalorder %s1601, 3
        %s1603 = scalar_select %p1602, %s1601, 3
        %s1604 = smul.addr %s1603, 2
        %s1605 = smul.addr %s1604, 4
        %s1606 = scalar_lea.vmem %s3, %s1605
      $region44: #{mss_loss.2} parent=39 // pred_fallthru
        _
    $region40: #{mss_loss.2} parent=5 // pred_fallthru
      _
  $region6: #{mss_loss.2} parent=0 // loop_footer
    %s13 = sadd.s32 1, %s9
  $region7: #{mss_loss.2} parent=0 // loop_footer_branch
    %8 = sbr.rel target = $region3
  $region8: #{mss_loss.2} parent=0 // loop_exit
    _

</llo_original>
